<compile_context>
chip_gen: v7x
topology: tpu7x:2x2x1
jax: 0.10.0
libtpu: 0.0.40
codegen_flags: <defaults>
</compile_context>

<pallas_src>
import jax
import jax.numpy as jnp
from jax.experimental import pallas as pl
from jax.experimental.pallas import tpu as pltpu  # noqa: F401  (kept per template)

# ---------------- small, T5-like config ----------------
VOCAB     = 128
D_MODEL   = 32
N_HEADS   = 4
D_KV      = 8
D_FF      = 64
N_LAYERS  = 2
N_BUCKETS = 8      # relative_attention_num_buckets
MAX_DIST  = 16     # relative_attention_max_distance
LN_EPS    = 1e-6
NEG_INF   = -1e9   # additive mask value (HF uses finfo.min; equivalent here)

INNER = N_HEADS * D_KV


# ---------------- in-kernel helpers ----------------
def _rmsnorm(x, w):
    # T5LayerNorm: x * rsqrt(mean(x^2) + eps) * weight   (no mean subtraction)
    var = jnp.mean(x * x, axis=-1, keepdims=True)
    return x * jax.lax.rsqrt(var + LN_EPS) * w


# ---------------- the single fused forward kernel ----------------
def _fused_forward_kernel(ids_ref, bias_ref, table_ref, lns_ref,
                          wqkv_ref, wo_ref, wi_ref, wof_ref,
                          emb_ref, enc_ref):
    BS = ids_ref.shape[0]

    # ---- shared embedding: in-kernel one-hot (iota == id) matmul on the MXU ----
    # (defensible only because VOCAB=128; see scaling TODO at top of file)
    ids = ids_ref[...]                                           # (BS, 1) int32
    iota = jax.lax.broadcasted_iota(jnp.int32, (BS, VOCAB), 1)
    onehot = (iota == ids).astype(jnp.float32)                   # (BS, VOCAB)
    emb = jnp.dot(onehot, table_ref[...], preferred_element_type=jnp.float32)
    emb_ref[...] = emb                                           # original_text_embeddings

    # combined attention bias (rel-pos + padding + cross-batch block mask),
    # precomputed in the wrapper and loaded ONCE for all layers.
    bias = bias_ref[...]                                         # (H, BS, BS)

    h = emb                                                      # (BS, D); dropout = identity
    for l in range(N_LAYERS):                                    # static unroll over layers
        # --- self-attention sub-layer (T5LayerSelfAttention) ---
        x = _rmsnorm(h, lns_ref[2 * l])                          # (BS, D)

        # fused QKV: one 2-D GEMM  (BS, D) @ (D, 3*INNER)
        qkv = jnp.dot(x, wqkv_ref[l], preferred_element_type=jnp.float32)

        def _split_heads(base):
            # heads -> leading batch axis (the one unavoidable
            # heads-in-lanes -> heads-as-batch relayout).
            return jnp.stack(
                [qkv[:, base + hh * D_KV: base + (hh + 1) * D_KV]
                 for hh in range(N_HEADS)], axis=0)              # (H, BS, D_KV)

        q = _split_heads(0)
        k = _split_heads(INNER)
        v = _split_heads(2 * INNER)

        # T5 does NOT scale scores by 1/sqrt(dk).  One head-batched score
        # einsum over the full (BS, BS) key range; the bias slab carries the
        # rel-pos bias, the padding mask and -1e9 on cross-batch keys, so the
        # result equals per-batch attention (cross-batch probs underflow to 0).
        s = jnp.einsum('hqd,hkd->hqk', q, k,
                       preferred_element_type=jnp.float32)       # (H, BS, BS)
        s = s + bias
        # explicit softmax: divide goes to the EUP via approx reciprocal
        m = jnp.max(s, axis=-1, keepdims=True)
        e = jnp.exp(s - m)
        denom = jnp.sum(e, axis=-1, keepdims=True)
        p = e * pl.reciprocal(denom, approx=True)
        ctx = jnp.einsum('hqk,hkd->hqd', p, v,
                         preferred_element_type=jnp.float32)     # (H, BS, D_KV)

        # merge heads back onto lanes, then ONE K=INNER output-projection GEMM
        ctx2d = jnp.concatenate([ctx[hh] for hh in range(N_HEADS)],
                                axis=-1)                         # (BS, INNER)
        h = h + jnp.dot(ctx2d, wo_ref[l], preferred_element_type=jnp.float32)

        # --- feed-forward sub-layer (T5LayerFF, ReLU variant) ---
        x2 = _rmsnorm(h, lns_ref[2 * l + 1])
        ff = jnp.maximum(
            jnp.dot(x2, wi_ref[l], preferred_element_type=jnp.float32), 0.0)
        h = h + jnp.dot(ff, wof_ref[l], preferred_element_type=jnp.float32)

    # --- final encoder RMSNorm ---
    enc_ref[...] = _rmsnorm(h, lns_ref[2 * N_LAYERS])            # encoder last_hidden_state


# ---------------- relative position bias (one-time XLA glue: integer/gather work) ----------------
def _relative_position_bucket(relative_position, num_buckets, max_distance):
    # bidirectional (encoder) bucketization, matches HF T5Attention._relative_position_bucket
    num_buckets = num_buckets // 2
    rel_buckets = (relative_position > 0).astype(jnp.int32) * num_buckets
    rp = jnp.abs(relative_position)
    max_exact = num_buckets // 2
    is_small = rp < max_exact
    rp_f = jnp.maximum(rp, 1).astype(jnp.float32)
    rp_large = max_exact + (
        jnp.log(rp_f / max_exact) / jnp.log(max_distance / max_exact)
        * (num_buckets - max_exact)
    ).astype(jnp.int32)
    rp_large = jnp.minimum(rp_large, num_buckets - 1)
    return rel_buckets + jnp.where(is_small, rp, rp_large)


def compute_position_bias(rel_bias_table, S):
    ctx = jnp.arange(S, dtype=jnp.int32)[:, None]
    mem = jnp.arange(S, dtype=jnp.int32)[None, :]
    buckets = _relative_position_bucket(mem - ctx, N_BUCKETS, MAX_DIST)  # [S, S]
    bias = rel_bias_table[buckets]                                       # [S, S, H]
    return jnp.transpose(bias, (2, 0, 1))                                # [H, S, S]


# ---------------- parameters (deterministic, in-script) ----------------
def init_params(key):
    ks = jax.random.split(key, 6)

    def rnd(k, shape, scale):
        return jax.random.normal(k, shape, jnp.float32) * scale

    return {
        "shared":   rnd(ks[0], (VOCAB, D_MODEL), 0.5),
        "rel_bias": rnd(ks[1], (N_BUCKETS, N_HEADS), 0.1),
        # all RMSNorm weights packed into one operand:
        # rows [2l] = pre-attention LN, [2l+1] = pre-FFN LN, [2L] = final LN.
        "lns":   jnp.ones((2 * N_LAYERS + 1, 1, D_MODEL), jnp.float32),
        # fused QKV weight: columns [0:INNER]=W_Q, [INNER:2I]=W_K, [2I:3I]=W_V
        # (each head-major in D_KV blocks).
        "wqkv":  rnd(ks[2], (N_LAYERS, D_MODEL, 3 * INNER), D_MODEL ** -0.5),
        # output projection, full (INNER, D) — consumed as one K=INNER GEMM.
        "wo":    rnd(ks[3], (N_LAYERS, INNER, D_MODEL), INNER ** -0.5),
        "wi":    rnd(ks[4], (N_LAYERS, D_MODEL, D_FF), D_MODEL ** -0.5),
        "wo_ff": rnd(ks[5], (N_LAYERS, D_FF, D_MODEL), D_FF ** -0.5),
    }


# ---------------- full forward (mirrors T5_with_T5Decoder.forward) ----------------
def t5_with_t5decoder_forward(params, input_ids, attention_mask):
    B, S = input_ids.shape
    BS = B * S

    # Combined bias slab [H, BS, BS] = rel-pos bias (own batch) + additive
    # padding mask on keys + NEG_INF on cross-batch keys.  Built once here so
    # the kernel does a single add per layer and gets a single DMA operand.
    pos = compute_position_bias(params["rel_bias"], S)                      # (H,S,S)
    pad = (1.0 - attention_mask.astype(jnp.float32)) * NEG_INF              # (B,S) keys
    same = jnp.where(jnp.eye(B, dtype=jnp.float32)[:, None, :, None] > 0.5,
                     0.0, NEG_INF)                                          # (B,1,B,1)
    bias = (pos[:, None, :, None, :]            # (H,1,S,1,S)
            + same[None]                        # (1,B,1,B,1)
            + pad[None, None, None, :, :])      # (1,1,1,B,S)
    bias = bias.reshape(N_HEADS, BS, BS)

    ids = input_ids.reshape(BS, 1).astype(jnp.int32)

    # advisory cost estimate so XLA schedules the surrounding glue around the call
    mm_flops = (2 * BS * VOCAB * D_MODEL
                + N_LAYERS * (2 * BS * D_MODEL * 3 * INNER
                              + 2 * N_HEADS * BS * BS * D_KV * 2
                              + 2 * BS * INNER * D_MODEL
                              + 2 * BS * D_MODEL * D_FF * 2))
    transc = N_LAYERS * (N_HEADS * BS * BS + N_HEADS * BS + 2 * BS) + BS
    bytes_acc = 4 * (BS * 1 + N_HEADS * BS * BS + VOCAB * D_MODEL
                     + (2 * N_LAYERS + 1) * D_MODEL
                     + N_LAYERS * (D_MODEL * 3 * INNER + INNER * D_MODEL
                                   + 2 * D_MODEL * D_FF)
                     + 2 * BS * D_MODEL)
    cost = pl.CostEstimate(flops=int(mm_flops), transcendentals=int(transc),
                           bytes_accessed=int(bytes_acc))

    emb_flat, enc_flat = pl.pallas_call(
        _fused_forward_kernel,
        # single launch, no grid: all 8 operands + activations (a few hundred
        # KiB after tile padding) stay resident in VMEM for the whole forward.
        out_shape=(jax.ShapeDtypeStruct((BS, D_MODEL), jnp.float32),
                   jax.ShapeDtypeStruct((BS, D_MODEL), jnp.float32)),
        cost_estimate=cost,
    )(ids, bias, params["shared"], params["lns"],
      params["wqkv"], params["wo"], params["wi"], params["wo_ff"])

    emb = emb_flat.reshape(B, S, D_MODEL)     # original_text_embeddings
    enc = enc_flat.reshape(B, S, D_MODEL)     # encoder_outputs.last_hidden_state
    return emb, enc


if __name__ == "__main__":
    key = jax.random.PRNGKey(0)
    pkey, ikey = jax.random.split(key)
    params = init_params(pkey)

    B, S = 2, 8
    input_ids = jax.random.randint(ikey, (B, S), 0, VOCAB, dtype=jnp.int32)
    attention_mask = jnp.ones((B, S), dtype=jnp.int32).at[1, 6:].set(0)

    fwd = jax.jit(t5_with_t5decoder_forward)
    emb, enc = fwd(params, input_ids, attention_mask)
    jax.block_until_ready((emb, enc))

    assert emb.shape == (B, S, D_MODEL)
    assert enc.shape == (B, S, D_MODEL)
    assert bool(jnp.all(jnp.isfinite(emb))) and bool(jnp.all(jnp.isfinite(enc)))
    print("KERNEL_OK")
</pallas_src>

<mosaic_0001>
module attributes {stable_mosaic.version = 11 : i64} {
  func.func @_fused_forward_kernel(%arg0: memref<16x1xi32, #tpu.memory_space<vmem>>, %arg1: memref<4x16x16xf32, #tpu.memory_space<vmem>>, %arg2: memref<128x32xf32, #tpu.memory_space<vmem>>, %arg3: memref<5x1x32xf32, #tpu.memory_space<vmem>>, %arg4: memref<2x32x96xf32, #tpu.memory_space<vmem>>, %arg5: memref<2x32x32xf32, #tpu.memory_space<vmem>>, %arg6: memref<2x32x64xf32, #tpu.memory_space<vmem>>, %arg7: memref<2x64x32xf32, #tpu.memory_space<vmem>>, %arg8: memref<16x32xf32, #tpu.memory_space<vmem>>, %arg9: memref<16x32xf32, #tpu.memory_space<vmem>>) attributes {dimension_semantics = [], scalar_prefetch = 0 : i64, scratch_operands = 0 : i64, tpu.core_type = #tpu.core_type<tc>} {
    %c0 = arith.constant 0 : index
    %c0_0 = arith.constant 0 : index
    %0 = vector.load %arg0[%c0, %c0_0] : memref<16x1xi32, #tpu.memory_space<vmem>>, vector<16x1xi32>
    %1 = tpu.iota {dimensions = array<i32: 1>} : vector<16x128xi32>
    %2 = vector.broadcast %0 : vector<16x1xi32> to vector<16x128xi32>
    %3 = arith.cmpi eq, %1, %2 : vector<16x128xi32>
    %4 = arith.extui %3 : vector<16x128xi1> to vector<16x128xi32>
    %5 = arith.sitofp %4 : vector<16x128xi32> to vector<16x128xf32>
    %c0_1 = arith.constant 0 : index
    %c0_2 = arith.constant 0 : index
    %6 = vector.load %arg2[%c0_1, %c0_2] : memref<128x32xf32, #tpu.memory_space<vmem>>, vector<128x32xf32>
    %cst = arith.constant dense<0.000000e+00> : vector<16x32xf32>
    %7 = tpu.matmul %5, %6, %cst {dimension_numbers = #tpu.dot_dimension_numbers<[1], [0], [0], [1], [0, 0, 1, 1], [], []>} : vector<16x128xf32>, vector<128x32xf32>, vector<16x32xf32> -> vector<16x32xf32>
    %c0_3 = arith.constant 0 : index
    %c0_4 = arith.constant 0 : index
    %8 = vector.load %arg8[%c0_3, %c0_4] : memref<16x32xf32, #tpu.memory_space<vmem>>, vector<16x32xf32>
    tpu.vector_store %arg8[%c0_3, %c0_4], %7 {strides = array<i32>} : memref<16x32xf32, #tpu.memory_space<vmem>>, vector<16x32xf32>,
    %c0_5 = arith.constant 0 : index
    %c0_6 = arith.constant 0 : index
    %c0_7 = arith.constant 0 : index
    %9 = vector.load %arg1[%c0_5, %c0_6, %c0_7] : memref<4x16x16xf32, #tpu.memory_space<vmem>>, vector<4x16x16xf32>
    %c0_8 = arith.constant 0 : index
    %c0_9 = arith.constant 0 : index
    %c0_10 = arith.constant 0 : index
    %10 = vector.load %arg3[%c0_8, %c0_9, %c0_10] : memref<5x1x32xf32, #tpu.memory_space<vmem>>, vector<1x1x32xf32>
    %11 = vector.shape_cast %10 : vector<1x1x32xf32> to vector<1x32xf32>
    %12 = arith.mulf %7, %7 : vector<16x32xf32>
    %cst_11 = arith.constant dense<0.000000e+00> : vector<16xf32>
    %13 = vector.multi_reduction <add>, %12, %cst_11 [1] : vector<16x32xf32> to vector<16xf32>
    %14 = vector.shape_cast %13 : vector<16xf32> to vector<16x1xf32>
    %cst_12 = arith.constant 3.200000e+01 : f32
    %15 = vector.broadcast %cst_12 : f32 to vector<16x1xf32>
    %16 = arith.divf %14, %15 : vector<16x1xf32>
    %cst_13 = arith.constant 9.99999997E-7 : f32
    %17 = vector.broadcast %cst_13 : f32 to vector<16x1xf32>
    %18 = arith.addf %16, %17 : vector<16x1xf32>
    %19 = math.rsqrt %18 : vector<16x1xf32>
    %20 = vector.broadcast %19 : vector<16x1xf32> to vector<16x32xf32>
    %21 = arith.mulf %7, %20 : vector<16x32xf32>
    %22 = vector.broadcast %11 : vector<1x32xf32> to vector<16x32xf32>
    %23 = arith.mulf %21, %22 : vector<16x32xf32>
    %c0_14 = arith.constant 0 : index
    %c0_15 = arith.constant 0 : index
    %c0_16 = arith.constant 0 : index
    %24 = vector.load %arg4[%c0_14, %c0_15, %c0_16] : memref<2x32x96xf32, #tpu.memory_space<vmem>>, vector<1x32x96xf32>
    %25 = vector.shape_cast %24 : vector<1x32x96xf32> to vector<32x96xf32>
    %cst_17 = arith.constant dense<0.000000e+00> : vector<16x96xf32>
    %26 = tpu.matmul %23, %25, %cst_17 {dimension_numbers = #tpu.dot_dimension_numbers<[1], [0], [0], [1], [0, 0, 1, 1], [], []>} : vector<16x32xf32>, vector<32x96xf32>, vector<16x96xf32> -> vector<16x96xf32>
    %27 = vector.extract_strided_slice %26 {offsets = [0, 0], sizes = [16, 8], strides = [1, 1]} : vector<16x96xf32> to vector<16x8xf32>
    %28 = vector.extract_strided_slice %26 {offsets = [0, 8], sizes = [16, 8], strides = [1, 1]} : vector<16x96xf32> to vector<16x8xf32>
    %29 = vector.extract_strided_slice %26 {offsets = [0, 16], sizes = [16, 8], strides = [1, 1]} : vector<16x96xf32> to vector<16x8xf32>
    %30 = vector.extract_strided_slice %26 {offsets = [0, 24], sizes = [16, 8], strides = [1, 1]} : vector<16x96xf32> to vector<16x8xf32>
    %31 = vector.shape_cast %27 : vector<16x8xf32> to vector<1x16x8xf32>
    %32 = vector.shape_cast %28 : vector<16x8xf32> to vector<1x16x8xf32>
    %33 = vector.shape_cast %29 : vector<16x8xf32> to vector<1x16x8xf32>
    %34 = vector.shape_cast %30 : vector<16x8xf32> to vector<1x16x8xf32>
    %35 = tpu.concatenate %31, %32, %33, %34 in 0 : vector<1x16x8xf32>, vector<1x16x8xf32>, vector<1x16x8xf32>, vector<1x16x8xf32> -> vector<4x16x8xf32>
    %36 = vector.extract_strided_slice %26 {offsets = [0, 32], sizes = [16, 8], strides = [1, 1]} : vector<16x96xf32> to vector<16x8xf32>
    %37 = vector.extract_strided_slice %26 {offsets = [0, 40], sizes = [16, 8], strides = [1, 1]} : vector<16x96xf32> to vector<16x8xf32>
    %38 = vector.extract_strided_slice %26 {offsets = [0, 48], sizes = [16, 8], strides = [1, 1]} : vector<16x96xf32> to vector<16x8xf32>
    %39 = vector.extract_strided_slice %26 {offsets = [0, 56], sizes = [16, 8], strides = [1, 1]} : vector<16x96xf32> to vector<16x8xf32>
    %40 = vector.shape_cast %36 : vector<16x8xf32> to vector<1x16x8xf32>
    %41 = vector.shape_cast %37 : vector<16x8xf32> to vector<1x16x8xf32>
    %42 = vector.shape_cast %38 : vector<16x8xf32> to vector<1x16x8xf32>
    %43 = vector.shape_cast %39 : vector<16x8xf32> to vector<1x16x8xf32>
    %44 = tpu.concatenate %40, %41, %42, %43 in 0 : vector<1x16x8xf32>, vector<1x16x8xf32>, vector<1x16x8xf32>, vector<1x16x8xf32> -> vector<4x16x8xf32>
    %45 = vector.extract_strided_slice %26 {offsets = [0, 64], sizes = [16, 8], strides = [1, 1]} : vector<16x96xf32> to vector<16x8xf32>
    %46 = vector.extract_strided_slice %26 {offsets = [0, 72], sizes = [16, 8], strides = [1, 1]} : vector<16x96xf32> to vector<16x8xf32>
    %47 = vector.extract_strided_slice %26 {offsets = [0, 80], sizes = [16, 8], strides = [1, 1]} : vector<16x96xf32> to vector<16x8xf32>
    %48 = vector.extract_strided_slice %26 {offsets = [0, 88], sizes = [16, 8], strides = [1, 1]} : vector<16x96xf32> to vector<16x8xf32>
    %49 = vector.shape_cast %45 : vector<16x8xf32> to vector<1x16x8xf32>
    %50 = vector.shape_cast %46 : vector<16x8xf32> to vector<1x16x8xf32>
    %51 = vector.shape_cast %47 : vector<16x8xf32> to vector<1x16x8xf32>
    %52 = vector.shape_cast %48 : vector<16x8xf32> to vector<1x16x8xf32>
    %53 = tpu.concatenate %49, %50, %51, %52 in 0 : vector<1x16x8xf32>, vector<1x16x8xf32>, vector<1x16x8xf32>, vector<1x16x8xf32> -> vector<4x16x8xf32>
    "tpu.trace_start"() <{level = 10 : i32, message = "hqd,hkd->hqk"}> : () -> ()
    %cst_18 = arith.constant dense<0.000000e+00> : vector<4x16x16xf32>
    %54 = tpu.matmul %35, %44, %cst_18 {dimension_numbers = #tpu.dot_dimension_numbers<[2], [2], [1], [1], [0, 0, 0, 1, 1, 1], [0], [0]>} : vector<4x16x8xf32>, vector<4x16x8xf32>, vector<4x16x16xf32> -> vector<4x16x16xf32>
    "tpu.trace_stop"() : () -> ()
    %55 = arith.addf %54, %9 : vector<4x16x16xf32>
    %cst_19 = arith.constant dense<0xFF800000> : vector<4x16xf32>
    %56 = vector.multi_reduction <maximumf>, %55, %cst_19 [2] : vector<4x16x16xf32> to vector<4x16xf32>
    %57 = vector.shape_cast %56 : vector<4x16xf32> to vector<4x16x1xf32>
    %58 = vector.broadcast %57 : vector<4x16x1xf32> to vector<4x16x16xf32>
    %59 = arith.subf %55, %58 : vector<4x16x16xf32>
    %60 = math.exp %59 : vector<4x16x16xf32>
    %cst_20 = arith.constant dense<0.000000e+00> : vector<4x16xf32>
    %61 = vector.multi_reduction <add>, %60, %cst_20 [2] : vector<4x16x16xf32> to vector<4x16xf32>
    %62 = vector.shape_cast %61 : vector<4x16xf32> to vector<4x16x1xf32>
    %63 = tpu.reciprocal %62 {approx = true} : vector<4x16x1xf32> -> vector<4x16x1xf32>
    %64 = vector.broadcast %63 : vector<4x16x1xf32> to vector<4x16x16xf32>
    %65 = arith.mulf %60, %64 : vector<4x16x16xf32>
    "tpu.trace_start"() <{level = 10 : i32, message = "hqk,hkd->hqd"}> : () -> ()
    %cst_21 = arith.constant dense<0.000000e+00> : vector<4x16x8xf32>
    %66 = tpu.matmul %65, %53, %cst_21 {dimension_numbers = #tpu.dot_dimension_numbers<[2], [1], [1], [2], [0, 0, 0, 1, 1, 2], [0], [0]>} : vector<4x16x16xf32>, vector<4x16x8xf32>, vector<4x16x8xf32> -> vector<4x16x8xf32>
    "tpu.trace_stop"() : () -> ()
    %67 = vector.extract_strided_slice %66 {offsets = [0, 0, 0], sizes = [1, 16, 8], strides = [1, 1, 1]} : vector<4x16x8xf32> to vector<1x16x8xf32>
    %68 = vector.shape_cast %67 : vector<1x16x8xf32> to vector<16x8xf32>
    %69 = vector.extract_strided_slice %66 {offsets = [1, 0, 0], sizes = [1, 16, 8], strides = [1, 1, 1]} : vector<4x16x8xf32> to vector<1x16x8xf32>
    %70 = vector.shape_cast %69 : vector<1x16x8xf32> to vector<16x8xf32>
    %71 = vector.extract_strided_slice %66 {offsets = [2, 0, 0], sizes = [1, 16, 8], strides = [1, 1, 1]} : vector<4x16x8xf32> to vector<1x16x8xf32>
    %72 = vector.shape_cast %71 : vector<1x16x8xf32> to vector<16x8xf32>
    %73 = vector.extract_strided_slice %66 {offsets = [3, 0, 0], sizes = [1, 16, 8], strides = [1, 1, 1]} : vector<4x16x8xf32> to vector<1x16x8xf32>
    %74 = vector.shape_cast %73 : vector<1x16x8xf32> to vector<16x8xf32>
    %75 = tpu.concatenate %68, %70, %72, %74 in 1 : vector<16x8xf32>, vector<16x8xf32>, vector<16x8xf32>, vector<16x8xf32> -> vector<16x32xf32>
    %c0_22 = arith.constant 0 : index
    %c0_23 = arith.constant 0 : index
    %c0_24 = arith.constant 0 : index
    %76 = vector.load %arg5[%c0_22, %c0_23, %c0_24] : memref<2x32x32xf32, #tpu.memory_space<vmem>>, vector<1x32x32xf32>
    %77 = vector.shape_cast %76 : vector<1x32x32xf32> to vector<32x32xf32>
    %cst_25 = arith.constant dense<0.000000e+00> : vector<16x32xf32>
    %78 = tpu.matmul %75, %77, %cst_25 {dimension_numbers = #tpu.dot_dimension_numbers<[1], [0], [0], [1], [0, 0, 1, 1], [], []>} : vector<16x32xf32>, vector<32x32xf32>, vector<16x32xf32> -> vector<16x32xf32>
    %79 = arith.addf %7, %78 : vector<16x32xf32>
    %c1 = arith.constant 1 : index
    %c0_26 = arith.constant 0 : index
    %c0_27 = arith.constant 0 : index
    %80 = vector.load %arg3[%c1, %c0_26, %c0_27] : memref<5x1x32xf32, #tpu.memory_space<vmem>>, vector<1x1x32xf32>
    %81 = vector.shape_cast %80 : vector<1x1x32xf32> to vector<1x32xf32>
    %82 = arith.mulf %79, %79 : vector<16x32xf32>
    %cst_28 = arith.constant dense<0.000000e+00> : vector<16xf32>
    %83 = vector.multi_reduction <add>, %82, %cst_28 [1] : vector<16x32xf32> to vector<16xf32>
    %84 = vector.shape_cast %83 : vector<16xf32> to vector<16x1xf32>
    %cst_29 = arith.constant 3.200000e+01 : f32
    %85 = vector.broadcast %cst_29 : f32 to vector<16x1xf32>
    %86 = arith.divf %84, %85 : vector<16x1xf32>
    %cst_30 = arith.constant 9.99999997E-7 : f32
    %87 = vector.broadcast %cst_30 : f32 to vector<16x1xf32>
    %88 = arith.addf %86, %87 : vector<16x1xf32>
    %89 = math.rsqrt %88 : vector<16x1xf32>
    %90 = vector.broadcast %89 : vector<16x1xf32> to vector<16x32xf32>
    %91 = arith.mulf %79, %90 : vector<16x32xf32>
    %92 = vector.broadcast %81 : vector<1x32xf32> to vector<16x32xf32>
    %93 = arith.mulf %91, %92 : vector<16x32xf32>
    %c0_31 = arith.constant 0 : index
    %c0_32 = arith.constant 0 : index
    %c0_33 = arith.constant 0 : index
    %94 = vector.load %arg6[%c0_31, %c0_32, %c0_33] : memref<2x32x64xf32, #tpu.memory_space<vmem>>, vector<1x32x64xf32>
    %95 = vector.shape_cast %94 : vector<1x32x64xf32> to vector<32x64xf32>
    %cst_34 = arith.constant dense<0.000000e+00> : vector<16x64xf32>
    %96 = tpu.matmul %93, %95, %cst_34 {dimension_numbers = #tpu.dot_dimension_numbers<[1], [0], [0], [1], [0, 0, 1, 1], [], []>} : vector<16x32xf32>, vector<32x64xf32>, vector<16x64xf32> -> vector<16x64xf32>
    %cst_35 = arith.constant 0.000000e+00 : f32
    %97 = vector.broadcast %cst_35 : f32 to vector<16x64xf32>
    %98 = arith.maximumf %96, %97 : vector<16x64xf32>
    %c0_36 = arith.constant 0 : index
    %c0_37 = arith.constant 0 : index
    %c0_38 = arith.constant 0 : index
    %99 = vector.load %arg7[%c0_36, %c0_37, %c0_38] : memref<2x64x32xf32, #tpu.memory_space<vmem>>, vector<1x64x32xf32>
    %100 = vector.shape_cast %99 : vector<1x64x32xf32> to vector<64x32xf32>
    %cst_39 = arith.constant dense<0.000000e+00> : vector<16x32xf32>
    %101 = tpu.matmul %98, %100, %cst_39 {dimension_numbers = #tpu.dot_dimension_numbers<[1], [0], [0], [1], [0, 0, 1, 1], [], []>} : vector<16x64xf32>, vector<64x32xf32>, vector<16x32xf32> -> vector<16x32xf32>
    %102 = arith.addf %79, %101 : vector<16x32xf32>
    %c2 = arith.constant 2 : index
    %c0_40 = arith.constant 0 : index
    %c0_41 = arith.constant 0 : index
    %103 = vector.load %arg3[%c2, %c0_40, %c0_41] : memref<5x1x32xf32, #tpu.memory_space<vmem>>, vector<1x1x32xf32>
    %104 = vector.shape_cast %103 : vector<1x1x32xf32> to vector<1x32xf32>
    %105 = arith.mulf %102, %102 : vector<16x32xf32>
    %cst_42 = arith.constant dense<0.000000e+00> : vector<16xf32>
    %106 = vector.multi_reduction <add>, %105, %cst_42 [1] : vector<16x32xf32> to vector<16xf32>
    %107 = vector.shape_cast %106 : vector<16xf32> to vector<16x1xf32>
    %cst_43 = arith.constant 3.200000e+01 : f32
    %108 = vector.broadcast %cst_43 : f32 to vector<16x1xf32>
    %109 = arith.divf %107, %108 : vector<16x1xf32>
    %cst_44 = arith.constant 9.99999997E-7 : f32
    %110 = vector.broadcast %cst_44 : f32 to vector<16x1xf32>
    %111 = arith.addf %109, %110 : vector<16x1xf32>
    %112 = math.rsqrt %111 : vector<16x1xf32>
    %113 = vector.broadcast %112 : vector<16x1xf32> to vector<16x32xf32>
    %114 = arith.mulf %102, %113 : vector<16x32xf32>
    %115 = vector.broadcast %104 : vector<1x32xf32> to vector<16x32xf32>
    %116 = arith.mulf %114, %115 : vector<16x32xf32>
    %c1_45 = arith.constant 1 : index
    %c0_46 = arith.constant 0 : index
    %c0_47 = arith.constant 0 : index
    %117 = vector.load %arg4[%c1_45, %c0_46, %c0_47] : memref<2x32x96xf32, #tpu.memory_space<vmem>>, vector<1x32x96xf32>
    %118 = vector.shape_cast %117 : vector<1x32x96xf32> to vector<32x96xf32>
    %cst_48 = arith.constant dense<0.000000e+00> : vector<16x96xf32>
    %119 = tpu.matmul %116, %118, %cst_48 {dimension_numbers = #tpu.dot_dimension_numbers<[1], [0], [0], [1], [0, 0, 1, 1], [], []>} : vector<16x32xf32>, vector<32x96xf32>, vector<16x96xf32> -> vector<16x96xf32>
    %120 = vector.extract_strided_slice %119 {offsets = [0, 0], sizes = [16, 8], strides = [1, 1]} : vector<16x96xf32> to vector<16x8xf32>
    %121 = vector.extract_strided_slice %119 {offsets = [0, 8], sizes = [16, 8], strides = [1, 1]} : vector<16x96xf32> to vector<16x8xf32>
    %122 = vector.extract_strided_slice %119 {offsets = [0, 16], sizes = [16, 8], strides = [1, 1]} : vector<16x96xf32> to vector<16x8xf32>
    %123 = vector.extract_strided_slice %119 {offsets = [0, 24], sizes = [16, 8], strides = [1, 1]} : vector<16x96xf32> to vector<16x8xf32>
    %124 = vector.shape_cast %120 : vector<16x8xf32> to vector<1x16x8xf32>
    %125 = vector.shape_cast %121 : vector<16x8xf32> to vector<1x16x8xf32>
    %126 = vector.shape_cast %122 : vector<16x8xf32> to vector<1x16x8xf32>
    %127 = vector.shape_cast %123 : vector<16x8xf32> to vector<1x16x8xf32>
    %128 = tpu.concatenate %124, %125, %126, %127 in 0 : vector<1x16x8xf32>, vector<1x16x8xf32>, vector<1x16x8xf32>, vector<1x16x8xf32> -> vector<4x16x8xf32>
    %129 = vector.extract_strided_slice %119 {offsets = [0, 32], sizes = [16, 8], strides = [1, 1]} : vector<16x96xf32> to vector<16x8xf32>
    %130 = vector.extract_strided_slice %119 {offsets = [0, 40], sizes = [16, 8], strides = [1, 1]} : vector<16x96xf32> to vector<16x8xf32>
    %131 = vector.extract_strided_slice %119 {offsets = [0, 48], sizes = [16, 8], strides = [1, 1]} : vector<16x96xf32> to vector<16x8xf32>
    %132 = vector.extract_strided_slice %119 {offsets = [0, 56], sizes = [16, 8], strides = [1, 1]} : vector<16x96xf32> to vector<16x8xf32>
    %133 = vector.shape_cast %129 : vector<16x8xf32> to vector<1x16x8xf32>
    %134 = vector.shape_cast %130 : vector<16x8xf32> to vector<1x16x8xf32>
    %135 = vector.shape_cast %131 : vector<16x8xf32> to vector<1x16x8xf32>
    %136 = vector.shape_cast %132 : vector<16x8xf32> to vector<1x16x8xf32>
    %137 = tpu.concatenate %133, %134, %135, %136 in 0 : vector<1x16x8xf32>, vector<1x16x8xf32>, vector<1x16x8xf32>, vector<1x16x8xf32> -> vector<4x16x8xf32>
    %138 = vector.extract_strided_slice %119 {offsets = [0, 64], sizes = [16, 8], strides = [1, 1]} : vector<16x96xf32> to vector<16x8xf32>
    %139 = vector.extract_strided_slice %119 {offsets = [0, 72], sizes = [16, 8], strides = [1, 1]} : vector<16x96xf32> to vector<16x8xf32>
    %140 = vector.extract_strided_slice %119 {offsets = [0, 80], sizes = [16, 8], strides = [1, 1]} : vector<16x96xf32> to vector<16x8xf32>
    %141 = vector.extract_strided_slice %119 {offsets = [0, 88], sizes = [16, 8], strides = [1, 1]} : vector<16x96xf32> to vector<16x8xf32>
    %142 = vector.shape_cast %138 : vector<16x8xf32> to vector<1x16x8xf32>
    %143 = vector.shape_cast %139 : vector<16x8xf32> to vector<1x16x8xf32>
    %144 = vector.shape_cast %140 : vector<16x8xf32> to vector<1x16x8xf32>
    %145 = vector.shape_cast %141 : vector<16x8xf32> to vector<1x16x8xf32>
    %146 = tpu.concatenate %142, %143, %144, %145 in 0 : vector<1x16x8xf32>, vector<1x16x8xf32>, vector<1x16x8xf32>, vector<1x16x8xf32> -> vector<4x16x8xf32>
    "tpu.trace_start"() <{level = 10 : i32, message = "hqd,hkd->hqk"}> : () -> ()
    %cst_49 = arith.constant dense<0.000000e+00> : vector<4x16x16xf32>
    %147 = tpu.matmul %128, %137, %cst_49 {dimension_numbers = #tpu.dot_dimension_numbers<[2], [2], [1], [1], [0, 0, 0, 1, 1, 1], [0], [0]>} : vector<4x16x8xf32>, vector<4x16x8xf32>, vector<4x16x16xf32> -> vector<4x16x16xf32>
    "tpu.trace_stop"() : () -> ()
    %148 = arith.addf %147, %9 : vector<4x16x16xf32>
    %cst_50 = arith.constant dense<0xFF800000> : vector<4x16xf32>
    %149 = vector.multi_reduction <maximumf>, %148, %cst_50 [2] : vector<4x16x16xf32> to vector<4x16xf32>
    %150 = vector.shape_cast %149 : vector<4x16xf32> to vector<4x16x1xf32>
    %151 = vector.broadcast %150 : vector<4x16x1xf32> to vector<4x16x16xf32>
    %152 = arith.subf %148, %151 : vector<4x16x16xf32>
    %153 = math.exp %152 : vector<4x16x16xf32>
    %cst_51 = arith.constant dense<0.000000e+00> : vector<4x16xf32>
    %154 = vector.multi_reduction <add>, %153, %cst_51 [2] : vector<4x16x16xf32> to vector<4x16xf32>
    %155 = vector.shape_cast %154 : vector<4x16xf32> to vector<4x16x1xf32>
    %156 = tpu.reciprocal %155 {approx = true} : vector<4x16x1xf32> -> vector<4x16x1xf32>
    %157 = vector.broadcast %156 : vector<4x16x1xf32> to vector<4x16x16xf32>
    %158 = arith.mulf %153, %157 : vector<4x16x16xf32>
    "tpu.trace_start"() <{level = 10 : i32, message = "hqk,hkd->hqd"}> : () -> ()
    %cst_52 = arith.constant dense<0.000000e+00> : vector<4x16x8xf32>
    %159 = tpu.matmul %158, %146, %cst_52 {dimension_numbers = #tpu.dot_dimension_numbers<[2], [1], [1], [2], [0, 0, 0, 1, 1, 2], [0], [0]>} : vector<4x16x16xf32>, vector<4x16x8xf32>, vector<4x16x8xf32> -> vector<4x16x8xf32>
    "tpu.trace_stop"() : () -> ()
    %160 = vector.extract_strided_slice %159 {offsets = [0, 0, 0], sizes = [1, 16, 8], strides = [1, 1, 1]} : vector<4x16x8xf32> to vector<1x16x8xf32>
    %161 = vector.shape_cast %160 : vector<1x16x8xf32> to vector<16x8xf32>
    %162 = vector.extract_strided_slice %159 {offsets = [1, 0, 0], sizes = [1, 16, 8], strides = [1, 1, 1]} : vector<4x16x8xf32> to vector<1x16x8xf32>
    %163 = vector.shape_cast %162 : vector<1x16x8xf32> to vector<16x8xf32>
    %164 = vector.extract_strided_slice %159 {offsets = [2, 0, 0], sizes = [1, 16, 8], strides = [1, 1, 1]} : vector<4x16x8xf32> to vector<1x16x8xf32>
    %165 = vector.shape_cast %164 : vector<1x16x8xf32> to vector<16x8xf32>
    %166 = vector.extract_strided_slice %159 {offsets = [3, 0, 0], sizes = [1, 16, 8], strides = [1, 1, 1]} : vector<4x16x8xf32> to vector<1x16x8xf32>
    %167 = vector.shape_cast %166 : vector<1x16x8xf32> to vector<16x8xf32>
    %168 = tpu.concatenate %161, %163, %165, %167 in 1 : vector<16x8xf32>, vector<16x8xf32>, vector<16x8xf32>, vector<16x8xf32> -> vector<16x32xf32>
    %c1_53 = arith.constant 1 : index
    %c0_54 = arith.constant 0 : index
    %c0_55 = arith.constant 0 : index
    %169 = vector.load %arg5[%c1_53, %c0_54, %c0_55] : memref<2x32x32xf32, #tpu.memory_space<vmem>>, vector<1x32x32xf32>
    %170 = vector.shape_cast %169 : vector<1x32x32xf32> to vector<32x32xf32>
    %cst_56 = arith.constant dense<0.000000e+00> : vector<16x32xf32>
    %171 = tpu.matmul %168, %170, %cst_56 {dimension_numbers = #tpu.dot_dimension_numbers<[1], [0], [0], [1], [0, 0, 1, 1], [], []>} : vector<16x32xf32>, vector<32x32xf32>, vector<16x32xf32> -> vector<16x32xf32>
    %172 = arith.addf %102, %171 : vector<16x32xf32>
    %c3 = arith.constant 3 : index
    %c0_57 = arith.constant 0 : index
    %c0_58 = arith.constant 0 : index
    %173 = vector.load %arg3[%c3, %c0_57, %c0_58] : memref<5x1x32xf32, #tpu.memory_space<vmem>>, vector<1x1x32xf32>
    %174 = vector.shape_cast %173 : vector<1x1x32xf32> to vector<1x32xf32>
    %175 = arith.mulf %172, %172 : vector<16x32xf32>
    %cst_59 = arith.constant dense<0.000000e+00> : vector<16xf32>
    %176 = vector.multi_reduction <add>, %175, %cst_59 [1] : vector<16x32xf32> to vector<16xf32>
    %177 = vector.shape_cast %176 : vector<16xf32> to vector<16x1xf32>
    %cst_60 = arith.constant 3.200000e+01 : f32
    %178 = vector.broadcast %cst_60 : f32 to vector<16x1xf32>
    %179 = arith.divf %177, %178 : vector<16x1xf32>
    %cst_61 = arith.constant 9.99999997E-7 : f32
    %180 = vector.broadcast %cst_61 : f32 to vector<16x1xf32>
    %181 = arith.addf %179, %180 : vector<16x1xf32>
    %182 = math.rsqrt %181 : vector<16x1xf32>
    %183 = vector.broadcast %182 : vector<16x1xf32> to vector<16x32xf32>
    %184 = arith.mulf %172, %183 : vector<16x32xf32>
    %185 = vector.broadcast %174 : vector<1x32xf32> to vector<16x32xf32>
    %186 = arith.mulf %184, %185 : vector<16x32xf32>
    %c1_62 = arith.constant 1 : index
    %c0_63 = arith.constant 0 : index
    %c0_64 = arith.constant 0 : index
    %187 = vector.load %arg6[%c1_62, %c0_63, %c0_64] : memref<2x32x64xf32, #tpu.memory_space<vmem>>, vector<1x32x64xf32>
    %188 = vector.shape_cast %187 : vector<1x32x64xf32> to vector<32x64xf32>
    %cst_65 = arith.constant dense<0.000000e+00> : vector<16x64xf32>
    %189 = tpu.matmul %186, %188, %cst_65 {dimension_numbers = #tpu.dot_dimension_numbers<[1], [0], [0], [1], [0, 0, 1, 1], [], []>} : vector<16x32xf32>, vector<32x64xf32>, vector<16x64xf32> -> vector<16x64xf32>
    %cst_66 = arith.constant 0.000000e+00 : f32
    %190 = vector.broadcast %cst_66 : f32 to vector<16x64xf32>
    %191 = arith.maximumf %189, %190 : vector<16x64xf32>
    %c1_67 = arith.constant 1 : index
    %c0_68 = arith.constant 0 : index
    %c0_69 = arith.constant 0 : index
    %192 = vector.load %arg7[%c1_67, %c0_68, %c0_69] : memref<2x64x32xf32, #tpu.memory_space<vmem>>, vector<1x64x32xf32>
    %193 = vector.shape_cast %192 : vector<1x64x32xf32> to vector<64x32xf32>
    %cst_70 = arith.constant dense<0.000000e+00> : vector<16x32xf32>
    %194 = tpu.matmul %191, %193, %cst_70 {dimension_numbers = #tpu.dot_dimension_numbers<[1], [0], [0], [1], [0, 0, 1, 1], [], []>} : vector<16x64xf32>, vector<64x32xf32>, vector<16x32xf32> -> vector<16x32xf32>
    %195 = arith.addf %172, %194 : vector<16x32xf32>
    %c4 = arith.constant 4 : index
    %c0_71 = arith.constant 0 : index
    %c0_72 = arith.constant 0 : index
    %196 = vector.load %arg3[%c4, %c0_71, %c0_72] : memref<5x1x32xf32, #tpu.memory_space<vmem>>, vector<1x1x32xf32>
    %197 = vector.shape_cast %196 : vector<1x1x32xf32> to vector<1x32xf32>
    %198 = arith.mulf %195, %195 : vector<16x32xf32>
    %cst_73 = arith.constant dense<0.000000e+00> : vector<16xf32>
    %199 = vector.multi_reduction <add>, %198, %cst_73 [1] : vector<16x32xf32> to vector<16xf32>
    %200 = vector.shape_cast %199 : vector<16xf32> to vector<16x1xf32>
    %cst_74 = arith.constant 3.200000e+01 : f32
    %201 = vector.broadcast %cst_74 : f32 to vector<16x1xf32>
    %202 = arith.divf %200, %201 : vector<16x1xf32>
    %cst_75 = arith.constant 9.99999997E-7 : f32
    %203 = vector.broadcast %cst_75 : f32 to vector<16x1xf32>
    %204 = arith.addf %202, %203 : vector<16x1xf32>
    %205 = math.rsqrt %204 : vector<16x1xf32>
    %206 = vector.broadcast %205 : vector<16x1xf32> to vector<16x32xf32>
    %207 = arith.mulf %195, %206 : vector<16x32xf32>
    %208 = vector.broadcast %197 : vector<1x32xf32> to vector<16x32xf32>
    %209 = arith.mulf %207, %208 : vector<16x32xf32>
    %c0_76 = arith.constant 0 : index
    %c0_77 = arith.constant 0 : index
    %210 = vector.load %arg9[%c0_76, %c0_77] : memref<16x32xf32, #tpu.memory_space<vmem>>, vector<16x32xf32>
    tpu.vector_store %arg9[%c0_76, %c0_77], %209 {strides = array<i32>} : memref<16x32xf32, #tpu.memory_space<vmem>>, vector<16x32xf32>,
    return
  }
}

</mosaic_0001>

<llo_original>
// kernel: t5_with_t5decoder_forward.1
$region0: #{t5_with_t5decoder_forward.1}
  #allocation0 [shape = 'u32[]', space=smem, size = 0x4, offset = 0x4, fixed_abs, tag = 'smem constant byte address 0x4 - core index']
  #allocation1 [shape = 'u32[144,128]{1,0:T(1,128)}', space=vmem, size = 0x12000, scoped, tag = 'internal scratch']
  %s0 = inlined_call_operand.vmem [shape: s32[16,1], index: 0, kind: input, shape index: {}]
  %s1 = inlined_call_operand.vmem [shape: f32[4,16,16], index: 1, kind: input, shape index: {}]
  %s2 = inlined_call_operand.vmem [shape: f32[128,32], index: 2, kind: input, shape index: {}]
  %s3 = inlined_call_operand.vmem [shape: f32[5,1,32], index: 3, kind: input, shape index: {}]
  %s4 = inlined_call_operand.vmem [shape: f32[2,32,96], index: 4, kind: input, shape index: {}]
  %s5 = inlined_call_operand.vmem [shape: f32[2,32,32], index: 5, kind: input, shape index: {}]
  %s6 = inlined_call_operand.vmem [shape: f32[2,32,64], index: 6, kind: input, shape index: {}]
  %s7 = inlined_call_operand.vmem [shape: f32[2,64,32], index: 7, kind: input, shape index: {}]
  %s8 = inlined_call_operand.hbm [shape: f32[16,32], index: 8, kind: output, shape index: {0}]
  %s9 = inlined_call_operand.hbm [shape: f32[16,32], index: 9, kind: output, shape index: {1}]
  %10 = xla_tuple %s8, %s9
  %s11 = sld [smem:[#allocation0]]
  $region50: #{t5_with_t5decoder_forward.1} parent=0
    _
  %s13 = ssub.s32 1, %s11
  %s14 = scalar_select 0, %s13, %s11
  $region1: #{t5_with_t5decoder_forward.1} parent=0
    #allocation2 [shape = 'u8[8192]{0}', space=vmem, size = 0x2000, scoped, tag = 'output window, operand 0, single buffered']
    #allocation3 [shape = 's32[1]{0}', space=sflag, size = 0x4, scoped, tag = 'scoped memory for t5_with_t5decoder_forward.1']
    #allocation4 [shape = 'u8[8192]{0}', space=vmem, size = 0x2000, scoped, tag = 'output window, operand 1, single buffered']
    #allocation5 [shape = 's32[1]{0}', space=sflag, size = 0x4, scoped, tag = 'scoped memory for t5_with_t5decoder_forward.1']
    %15 = vsyncpa [#allocation3], 0
    %16 = vsyncpa [#allocation5], 0
    // Predicated region
    $region2: #{t5_with_t5decoder_forward.1} parent=1 // pred_check
      _
    $region3: #{t5_with_t5decoder_forward.1} parent=1 // pred_check_branch
      %18 = sbr.rel (0) target = $region5
    $region4: #{t5_with_t5decoder_forward.1} parent=1 // pred_region
      _
    $region5: #{t5_with_t5decoder_forward.1} parent=1 // pred_fallthru
      _
    // Predicated region
    $region6: #{t5_with_t5decoder_forward.1} parent=1 // pred_check
      _
    $region7: #{t5_with_t5decoder_forward.1} parent=1 // pred_check_branch
      %20 = sbr.rel (0) target = $region9
    $region8: #{t5_with_t5decoder_forward.1} parent=1 // pred_region
      _
    $region9: #{t5_with_t5decoder_forward.1} parent=1 // pred_fallthru
      _
    // Predicated region
    $region10: #{t5_with_t5decoder_forward.1} parent=1 // pred_check
      _
    $region11: #{t5_with_t5decoder_forward.1} parent=1 // pred_check_branch
      %22 = sbr.rel (0) target = $region13
    $region12: #{t5_with_t5decoder_forward.1} parent=1 // pred_region
      _
    $region13: #{t5_with_t5decoder_forward.1} parent=1 // pred_fallthru
      _
    // Predicated region
    $region14: #{t5_with_t5decoder_forward.1} parent=1 // pred_check
      _
    $region15: #{t5_with_t5decoder_forward.1} parent=1 // pred_check_branch
      %24 = sbr.rel (0) target = $region17
    $region16: #{t5_with_t5decoder_forward.1} parent=1 // pred_region
      _
    $region17: #{t5_with_t5decoder_forward.1} parent=1 // pred_fallthru
      _
    // Predicated region
    $region18: #{t5_with_t5decoder_forward.1} parent=1 // pred_check
      _
    $region19: #{t5_with_t5decoder_forward.1} parent=1 // pred_check_branch
      %26 = sbr.rel (0) target = $region21
    $region20: #{t5_with_t5decoder_forward.1} parent=1 // pred_region
      _
    $region21: #{t5_with_t5decoder_forward.1} parent=1 // pred_fallthru
      _
    // Predicated region
    $region22: #{t5_with_t5decoder_forward.1} parent=1 // pred_check
      _
    $region23: #{t5_with_t5decoder_forward.1} parent=1 // pred_check_branch
      %28 = sbr.rel (0) target = $region25
    $region24: #{t5_with_t5decoder_forward.1} parent=1 // pred_region
      _
    $region25: #{t5_with_t5decoder_forward.1} parent=1 // pred_fallthru
      _
    // Predicated region
    $region26: #{t5_with_t5decoder_forward.1} parent=1 // pred_check
      _
    $region27: #{t5_with_t5decoder_forward.1} parent=1 // pred_check_branch
      %30 = sbr.rel (0) target = $region29
    $region28: #{t5_with_t5decoder_forward.1} parent=1 // pred_region
      _
    $region29: #{t5_with_t5decoder_forward.1} parent=1 // pred_fallthru
      _
    // Predicated region
    $region30: #{t5_with_t5decoder_forward.1} parent=1 // pred_check
      _
    $region31: #{t5_with_t5decoder_forward.1} parent=1 // pred_check_branch
      %32 = sbr.rel (0) target = $region33
    $region32: #{t5_with_t5decoder_forward.1} parent=1 // pred_region
      _
    $region33: #{t5_with_t5decoder_forward.1} parent=1 // pred_fallthru
      _
    %v33 = vld [vmem:[%s0] sm:$0xff]
    %v34 = vld [vmem:[%s0 + $0x8] sm:$0xff]
    %v35 = vlaneseq
    %v36 = vand.u32 %v35, 127
    %37 = vset.pattern.permute.xlu0 0
    %38 = vperm.xlu0 %37, %v33
    %v39 = vpop.permute.xlu0 %38
    %40 = vset.pattern.permute.xlu0 0
    %41 = vperm.xlu0 %40, %v34
    %v42 = vpop.permute.xlu0 %41
    %vm43 = vcmp.eq.s32.totalorder %v36, %v39
    %vm44 = vcmp.eq.s32.totalorder %v36, %v42
    %v45 = vsel %vm43, 1, 0
    %v46 = vsel %vm44, 1, 0
    %v47 = vcvt.s32.f32 %v45
    %v48 = vcvt.s32.f32 %v46
    %v49 = vld [vmem:[%s2] sm:$0xff]
    %v50 = vld [vmem:[%s2 + $0x8] sm:$0xff]
    %v51 = vld [vmem:[%s2 + $0x10] sm:$0xff]
    %v52 = vld [vmem:[%s2 + $0x18] sm:$0xff]
    %v53 = vld [vmem:[%s2 + $0x20] sm:$0xff]
    %v54 = vld [vmem:[%s2 + $0x28] sm:$0xff]
    %v55 = vld [vmem:[%s2 + $0x30] sm:$0xff]
    %v56 = vld [vmem:[%s2 + $0x38] sm:$0xff]
    %v57 = vld [vmem:[%s2 + $0x40] sm:$0xff]
    %v58 = vld [vmem:[%s2 + $0x48] sm:$0xff]
    %v59 = vld [vmem:[%s2 + $0x50] sm:$0xff]
    %v60 = vld [vmem:[%s2 + $0x58] sm:$0xff]
    %v61 = vld [vmem:[%s2 + $0x60] sm:$0xff]
    %v62 = vld [vmem:[%s2 + $0x68] sm:$0xff]
    %v63 = vld [vmem:[%s2 + $0x70] sm:$0xff]
    %v64 = vld [vmem:[%s2 + $0x78] sm:$0xff]
    %65 = vmatprep.subr.mxu0 0.0
    %66 = vmatpush1.msra.mxu0 %v49
    %67 = vmatprep.subr.mxu0 0.0
    %68 = vmatpush1.msra.mxu0 %v50
    %69 = vmatprep.subr.mxu0 0.0
    %70 = vmatpush1.msra.mxu0 %v51
    %71 = vmatprep.subr.mxu0 0.0
    %72 = vmatpush1.msra.mxu0 %v52
    %73 = vmatprep.subr.mxu0 0.0
    %74 = vmatpush1.msra.mxu0 %v53
    %75 = vmatprep.subr.mxu0 0.0
    %76 = vmatpush1.msra.mxu0 %v54
    %77 = vmatprep.subr.mxu0 0.0
    %78 = vmatpush1.msra.mxu0 %v55
    %79 = vmatprep.subr.mxu0 0.0
    %80 = vmatpush1.msra.mxu0 %v56
    %81 = vmatprep.subr.mxu0 0.0
    %82 = vmatpush1.msra.mxu0 %v57
    %83 = vmatprep.subr.mxu0 0.0
    %84 = vmatpush1.msra.mxu0 %v58
    %85 = vmatprep.subr.mxu0 0.0
    %86 = vmatpush1.msra.mxu0 %v59
    %87 = vmatprep.subr.mxu0 0.0
    %88 = vmatpush1.msra.mxu0 %v60
    %89 = vmatprep.subr.mxu0 0.0
    %90 = vmatpush1.msra.mxu0 %v61
    %91 = vmatprep.subr.mxu0 0.0
    %92 = vmatpush1.msra.mxu0 %v62
    %93 = vmatprep.subr.mxu0 0.0
    %94 = vmatpush1.msra.mxu0 %v63
    %95 = vmatprep.subr.mxu0 0.0
    %96 = vmatpush1.msra.mxu0 %v64
    %97 = vmatprep.subr.mxu0 0.0
    %98 = vmatpush1.msra.mxu0 0.0
    %99 = vmatprep.subr.mxu0 0.0
    %100 = vmatpush1.msra.mxu0 0.0
    %101 = vmatprep.subr.mxu0 0.0
    %102 = vmatpush1.msra.mxu0 0.0
    %103 = vmatprep.subr.mxu0 0.0
    %104 = vmatpush1.msra.mxu0 0.0
    %105 = vmatprep.subr.mxu0 0.0
    %106 = vmatpush1.msra.mxu0 0.0
    %107 = vmatprep.subr.mxu0 0.0
    %108 = vmatpush1.msra.mxu0 0.0
    %109 = vmatprep.subr.mxu0 0.0
    %110 = vmatpush1.msra.mxu0 0.0
    %111 = vmatprep.subr.mxu0 0.0
    %112 = vmatpush1.msra.mxu0 0.0
    %113 = vmatprep.subr.mxu0 0.0
    %114 = vmatpush1.msra.mxu0 0.0
    %115 = vmatprep.subr.mxu0 0.0
    %116 = vmatpush1.msra.mxu0 0.0
    %117 = vmatprep.subr.mxu0 0.0
    %118 = vmatpush1.msra.mxu0 0.0
    %119 = vmatprep.subr.mxu0 0.0
    %120 = vmatpush1.msra.mxu0 0.0
    %121 = vmatprep.subr.mxu0 0.0
    %122 = vmatpush1.msra.mxu0 0.0
    %123 = vmatprep.subr.mxu0 0.0
    %124 = vmatpush1.msra.mxu0 0.0
    %125 = vmatprep.subr.mxu0 0.0
    %126 = vmatpush1.msra.mxu0 0.0
    %127 = vmatprep.subr.mxu0 0.0
    %128 = vmatpush1.msra.mxu0 0.0
    %129 = vmatprep.mubr.f32.mxu0 0.0
    %130 = vmatmul.mubr.f32.gmra.mrb[0].mxu0 %v47
    %v131 = vpop.f32.mrb[0].mxu0
    %v132 = vadd.f32 0.0, %v131
    %v133 = vpop.f32.mrb[0].mxu0
    %134 = vmatprep.mubr.f32.mxu0 0.0
    %135 = vmatmul.mubr.f32.gmra.mrb[0].mxu0 %v48
    %v136 = vpop.f32.mrb[0].mxu0
    %v137 = vadd.f32 0.0, %v136
    %v138 = vpop.f32.mrb[0].mxu0
    %139 = vdwg.mxu0
    %vm140 = vcmask 261120
    %141 = vst.msk [vmem:[#allocation2] sm:$0xff] %vm140, %v132
    %142 = vst.msk [vmem:[#allocation2 + $0x8] sm:$0xff] %vm140, %v137
    %v143 = vld [vmem:[%s1] sm:$0xff]
    %v144 = vld [vmem:[%s1 + $0x8] sm:$0xff]
    %v145 = vld [vmem:[%s1 + $0x10] sm:$0xff]
    %v146 = vld [vmem:[%s1 + $0x18] sm:$0xff]
    %v147 = vld [vmem:[%s1 + $0x20] sm:$0xff]
    %v148 = vld [vmem:[%s1 + $0x28] sm:$0xff]
    %v149 = vld [vmem:[%s1 + $0x30] sm:$0xff]
    %v150 = vld [vmem:[%s1 + $0x38] sm:$0xff]
    %v151 = vld [vmem:[%s3] sm:$0x1]
    %v152 = vmul.f32 %v132, %v132
    %v153 = vmul.f32 %v137, %v137
    %v154 = vsel %vm140, %v152, 0.0
    %155 = vadd.xlane.f32.xlu0 %v154
    %v156 = vpop.xlane.xlu0 %155
    %v157 = vsel %vm140, %v153, 0.0
    %158 = vadd.xlane.f32.xlu0 %v157
    %v159 = vpop.xlane.xlu0 %158
    %v160 = vrcp.pop 32.0
    %v161 = vmul.f32 %v156, %v160
    %v162 = vmul.f32 %v159, %v160
    %v163 = vadd.f32 %v161, 1e-06
    %v164 = vadd.f32 %v162, 1e-06
    %v165 = vrsqrt.pop %v163
    %v166 = vrsqrt.pop %v164
    %v167 = vmul.f32 %v132, %v165
    %v168 = vmul.f32 %v137, %v166
    %v170 = vlaneseq
    %v171 = vshrl.u32 %v170, 7
    %v172 = vsub.s32 0, %v171
    %v173 = vrot.slane %v151, %v172
    %v175 = vmul.f32 %v167, %v173
    %v176 = vmul.f32 %v168, %v173
    %v177 = vld [vmem:[%s4] sm:$0xff]
    %v178 = vld [vmem:[%s4 + $0x8] sm:$0xff]
    %v179 = vld [vmem:[%s4 + $0x10] sm:$0xff]
    %v180 = vld [vmem:[%s4 + $0x18] sm:$0xff]
    %v182 = vsel %vm140, %v175, 0
    %v185 = vsel %vm140, %v176, 0
    %187 = vmatprep.subr.mxu0 0.0
    %188 = vmatpush1.msra.mxu0 %v177
    %189 = vmatprep.subr.mxu0 0.0
    %190 = vmatpush1.msra.mxu0 %v178
    %191 = vmatprep.subr.mxu0 0.0
    %192 = vmatpush1.msra.mxu0 %v179
    %193 = vmatprep.subr.mxu0 0.0
    %194 = vmatpush1.msra.mxu0 %v180
    %195 = vmatprep.subr.mxu0 0.0
    %196 = vmatpush1.msra.mxu0 0.0
    %197 = vmatprep.subr.mxu0 0.0
    %198 = vmatpush1.msra.mxu0 0.0
    %199 = vmatprep.subr.mxu0 0.0
    %200 = vmatpush1.msra.mxu0 0.0
    %201 = vmatprep.subr.mxu0 0.0
    %202 = vmatpush1.msra.mxu0 0.0
    %203 = vmatprep.subr.mxu0 0.0
    %204 = vmatpush1.msra.mxu0 0.0
    %205 = vmatprep.subr.mxu0 0.0
    %206 = vmatpush1.msra.mxu0 0.0
    %207 = vmatprep.subr.mxu0 0.0
    %208 = vmatpush1.msra.mxu0 0.0
    %209 = vmatprep.subr.mxu0 0.0
    %210 = vmatpush1.msra.mxu0 0.0
    %211 = vmatprep.subr.mxu0 0.0
    %212 = vmatpush1.msra.mxu0 0.0
    %213 = vmatprep.subr.mxu0 0.0
    %214 = vmatpush1.msra.mxu0 0.0
    %215 = vmatprep.subr.mxu0 0.0
    %216 = vmatpush1.msra.mxu0 0.0
    %217 = vmatprep.subr.mxu0 0.0
    %218 = vmatpush1.msra.mxu0 0.0
    %219 = vmatprep.subr.mxu0 0.0
    %220 = vmatpush1.msra.mxu0 0.0
    %221 = vmatprep.subr.mxu0 0.0
    %222 = vmatpush1.msra.mxu0 0.0
    %223 = vmatprep.subr.mxu0 0.0
    %224 = vmatpush1.msra.mxu0 0.0
    %225 = vmatprep.subr.mxu0 0.0
    %226 = vmatpush1.msra.mxu0 0.0
    %227 = vmatprep.subr.mxu0 0.0
    %228 = vmatpush1.msra.mxu0 0.0
    %229 = vmatprep.subr.mxu0 0.0
    %230 = vmatpush1.msra.mxu0 0.0
    %231 = vmatprep.subr.mxu0 0.0
    %232 = vmatpush1.msra.mxu0 0.0
    %233 = vmatprep.subr.mxu0 0.0
    %234 = vmatpush1.msra.mxu0 0.0
    %235 = vmatprep.subr.mxu0 0.0
    %236 = vmatpush1.msra.mxu0 0.0
    %237 = vmatprep.subr.mxu0 0.0
    %238 = vmatpush1.msra.mxu0 0.0
    %239 = vmatprep.subr.mxu0 0.0
    %240 = vmatpush1.msra.mxu0 0.0
    %241 = vmatprep.subr.mxu0 0.0
    %242 = vmatpush1.msra.mxu0 0.0
    %243 = vmatprep.subr.mxu0 0.0
    %244 = vmatpush1.msra.mxu0 0.0
    %245 = vmatprep.subr.mxu0 0.0
    %246 = vmatpush1.msra.mxu0 0.0
    %247 = vmatprep.subr.mxu0 0.0
    %248 = vmatpush1.msra.mxu0 0.0
    %249 = vmatprep.subr.mxu0 0.0
    %250 = vmatpush1.msra.mxu0 0.0
    %251 = vmatprep.mubr.f32.mxu0 0.0
    %252 = vmatmul.mubr.f32.gmra.mrb[0].mxu0 %v182
    %v253 = vpop.f32.mrb[0].mxu0
    %v254 = vadd.f32 0.0, %v253
    %v255 = vpop.f32.mrb[0].mxu0
    %256 = vmatprep.mubr.f32.mxu0 0.0
    %257 = vmatmul.mubr.f32.gmra.mrb[0].mxu0 %v185
    %v258 = vpop.f32.mrb[0].mxu0
    %v259 = vadd.f32 0.0, %v258
    %v260 = vpop.f32.mrb[0].mxu0
    %261 = vdwg.mxu0
    %264 = vrot.lane.b32.xlu0 %v254, 120
    %v265 = vpop.permute.xlu0 %264
    %266 = vrot.lane.b32.xlu0 %v259, 120
    %v267 = vpop.permute.xlu0 %266
    %268 = vrot.lane.b32.xlu0 %v254, 112
    %v269 = vpop.permute.xlu0 %268
    %270 = vrot.lane.b32.xlu0 %v259, 112
    %v271 = vpop.permute.xlu0 %270
    %272 = vrot.lane.b32.xlu0 %v254, 104
    %v273 = vpop.permute.xlu0 %272
    %274 = vrot.lane.b32.xlu0 %v259, 104
    %v275 = vpop.permute.xlu0 %274
    %276 = vrot.lane.b32.xlu0 %v254, 96
    %v277 = vpop.permute.xlu0 %276
    %278 = vrot.lane.b32.xlu0 %v259, 96
    %v279 = vpop.permute.xlu0 %278
    %vm280 = vcmask 64512
    %v281 = vsel %vm280, %v254, 0
    %v283 = vsel %vm280, %v259, 0
    %v285 = vsel %vm280, %v277, 0
    %v287 = vsel %vm280, %v279, 0
    %289 = vmatprep.subr.mxu0 0.0
    %290 = vmatpush1.xpose.msra.mxu0 %v285
    %291 = vmatprep.subr.mxu0 0.0
    %292 = vmatpush1.xpose.msra.mxu0 %v287
    %293 = vmatprep.subr.mxu0 0.0
    %294 = vmatpush1.xpose.msra.mxu0 0.0
    %295 = vmatprep.subr.mxu0 0.0
    %296 = vmatpush1.xpose.msra.mxu0 0.0
    %297 = vmatprep.subr.mxu0 0.0
    %298 = vmatpush1.xpose.msra.mxu0 0.0
    %299 = vmatprep.subr.mxu0 0.0
    %300 = vmatpush1.xpose.msra.mxu0 0.0
    %301 = vmatprep.subr.mxu0 0.0
    %302 = vmatpush1.xpose.msra.mxu0 0.0
    %303 = vmatprep.subr.mxu0 0.0
    %304 = vmatpush1.xpose.msra.mxu0 0.0
    %305 = vmatprep.subr.mxu0 0.0
    %306 = vmatpush1.xpose.msra.mxu0 0.0
    %307 = vmatprep.subr.mxu0 0.0
    %308 = vmatpush1.xpose.msra.mxu0 0.0
    %309 = vmatprep.subr.mxu0 0.0
    %310 = vmatpush1.xpose.msra.mxu0 0.0
    %311 = vmatprep.subr.mxu0 0.0
    %312 = vmatpush1.xpose.msra.mxu0 0.0
    %313 = vmatprep.subr.mxu0 0.0
    %314 = vmatpush1.xpose.msra.mxu0 0.0
    %315 = vmatprep.subr.mxu0 0.0
    %316 = vmatpush1.xpose.msra.mxu0 0.0
    %317 = vmatprep.subr.mxu0 0.0
    %318 = vmatpush1.xpose.msra.mxu0 0.0
    %319 = vmatprep.subr.mxu0 0.0
    %320 = vmatpush1.xpose.msra.mxu0 0.0
    %321 = vmatprep.subr.mxu0 0.0
    %322 = vmatpush1.xpose.msra.mxu0 0.0
    %323 = vmatprep.subr.mxu0 0.0
    %324 = vmatpush1.xpose.msra.mxu0 0.0
    %325 = vmatprep.subr.mxu0 0.0
    %326 = vmatpush1.xpose.msra.mxu0 0.0
    %327 = vmatprep.subr.mxu0 0.0
    %328 = vmatpush1.xpose.msra.mxu0 0.0
    %329 = vmatprep.subr.mxu0 0.0
    %330 = vmatpush1.xpose.msra.mxu0 0.0
    %331 = vmatprep.subr.mxu0 0.0
    %332 = vmatpush1.xpose.msra.mxu0 0.0
    %333 = vmatprep.subr.mxu0 0.0
    %334 = vmatpush1.xpose.msra.mxu0 0.0
    %335 = vmatprep.subr.mxu0 0.0
    %336 = vmatpush1.xpose.msra.mxu0 0.0
    %337 = vmatprep.subr.mxu0 0.0
    %338 = vmatpush1.xpose.msra.mxu0 0.0
    %339 = vmatprep.subr.mxu0 0.0
    %340 = vmatpush1.xpose.msra.mxu0 0.0
    %341 = vmatprep.subr.mxu0 0.0
    %342 = vmatpush1.xpose.msra.mxu0 0.0
    %343 = vmatprep.subr.mxu0 0.0
    %344 = vmatpush1.xpose.msra.mxu0 0.0
    %345 = vmatprep.subr.mxu0 0.0
    %346 = vmatpush1.xpose.msra.mxu0 0.0
    %347 = vmatprep.subr.mxu0 0.0
    %348 = vmatpush1.xpose.msra.mxu0 0.0
    %349 = vmatprep.subr.mxu0 0.0
    %350 = vmatpush1.xpose.msra.mxu0 0.0
    %351 = vmatprep.subr.mxu0 0.0
    %352 = vmatpush1.xpose.msra.mxu0 0.0
    %353 = vmatprep.mubr.f32.mxu0 0.0
    %354 = vmatmul.mubr.f32.gmra.mrb[0].mxu0 %v281
    %v355 = vpop.f32.mrb[0].mxu0
    %v356 = vadd.f32 %v143, %v355
    %v357 = vpop.f32.mrb[0].mxu0
    %358 = vmatprep.mubr.f32.mxu0 0.0
    %359 = vmatmul.mubr.f32.gmra.mrb[0].mxu0 %v283
    %v360 = vpop.f32.mrb[0].mxu0
    %v361 = vadd.f32 %v144, %v360
    %v362 = vpop.f32.mrb[0].mxu0
    %363 = vdwg.mxu0
    %364 = vrot.lane.b32.xlu0 %v265, 96
    %v365 = vpop.permute.xlu0 %364
    %366 = vrot.lane.b32.xlu0 %v267, 96
    %v367 = vpop.permute.xlu0 %366
    %v368 = vsel %vm280, %v265, 0
    %v370 = vsel %vm280, %v267, 0
    %v372 = vsel %vm280, %v365, 0
    %v374 = vsel %vm280, %v367, 0
    %376 = vmatprep.subr.mxu0 0.0
    %377 = vmatpush1.xpose.msra.mxu0 %v372
    %378 = vmatprep.subr.mxu0 0.0
    %379 = vmatpush1.xpose.msra.mxu0 %v374
    %380 = vmatprep.subr.mxu0 0.0
    %381 = vmatpush1.xpose.msra.mxu0 0.0
    %382 = vmatprep.subr.mxu0 0.0
    %383 = vmatpush1.xpose.msra.mxu0 0.0
    %384 = vmatprep.subr.mxu0 0.0
    %385 = vmatpush1.xpose.msra.mxu0 0.0
    %386 = vmatprep.subr.mxu0 0.0
    %387 = vmatpush1.xpose.msra.mxu0 0.0
    %388 = vmatprep.subr.mxu0 0.0
    %389 = vmatpush1.xpose.msra.mxu0 0.0
    %390 = vmatprep.subr.mxu0 0.0
    %391 = vmatpush1.xpose.msra.mxu0 0.0
    %392 = vmatprep.subr.mxu0 0.0
    %393 = vmatpush1.xpose.msra.mxu0 0.0
    %394 = vmatprep.subr.mxu0 0.0
    %395 = vmatpush1.xpose.msra.mxu0 0.0
    %396 = vmatprep.subr.mxu0 0.0
    %397 = vmatpush1.xpose.msra.mxu0 0.0
    %398 = vmatprep.subr.mxu0 0.0
    %399 = vmatpush1.xpose.msra.mxu0 0.0
    %400 = vmatprep.subr.mxu0 0.0
    %401 = vmatpush1.xpose.msra.mxu0 0.0
    %402 = vmatprep.subr.mxu0 0.0
    %403 = vmatpush1.xpose.msra.mxu0 0.0
    %404 = vmatprep.subr.mxu0 0.0
    %405 = vmatpush1.xpose.msra.mxu0 0.0
    %406 = vmatprep.subr.mxu0 0.0
    %407 = vmatpush1.xpose.msra.mxu0 0.0
    %408 = vmatprep.subr.mxu0 0.0
    %409 = vmatpush1.xpose.msra.mxu0 0.0
    %410 = vmatprep.subr.mxu0 0.0
    %411 = vmatpush1.xpose.msra.mxu0 0.0
    %412 = vmatprep.subr.mxu0 0.0
    %413 = vmatpush1.xpose.msra.mxu0 0.0
    %414 = vmatprep.subr.mxu0 0.0
    %415 = vmatpush1.xpose.msra.mxu0 0.0
    %416 = vmatprep.subr.mxu0 0.0
    %417 = vmatpush1.xpose.msra.mxu0 0.0
    %418 = vmatprep.subr.mxu0 0.0
    %419 = vmatpush1.xpose.msra.mxu0 0.0
    %420 = vmatprep.subr.mxu0 0.0
    %421 = vmatpush1.xpose.msra.mxu0 0.0
    %422 = vmatprep.subr.mxu0 0.0
    %423 = vmatpush1.xpose.msra.mxu0 0.0
    %424 = vmatprep.subr.mxu0 0.0
    %425 = vmatpush1.xpose.msra.mxu0 0.0
    %426 = vmatprep.subr.mxu0 0.0
    %427 = vmatpush1.xpose.msra.mxu0 0.0
    %428 = vmatprep.subr.mxu0 0.0
    %429 = vmatpush1.xpose.msra.mxu0 0.0
    %430 = vmatprep.subr.mxu0 0.0
    %431 = vmatpush1.xpose.msra.mxu0 0.0
    %432 = vmatprep.subr.mxu0 0.0
    %433 = vmatpush1.xpose.msra.mxu0 0.0
    %434 = vmatprep.subr.mxu0 0.0
    %435 = vmatpush1.xpose.msra.mxu0 0.0
    %436 = vmatprep.subr.mxu0 0.0
    %437 = vmatpush1.xpose.msra.mxu0 0.0
    %438 = vmatprep.subr.mxu0 0.0
    %439 = vmatpush1.xpose.msra.mxu0 0.0
    %440 = vmatprep.mubr.f32.mxu0 0.0
    %441 = vmatmul.mubr.f32.gmra.mrb[0].mxu0 %v368
    %v442 = vpop.f32.mrb[0].mxu0
    %v443 = vadd.f32 %v145, %v442
    %v444 = vpop.f32.mrb[0].mxu0
    %445 = vmatprep.mubr.f32.mxu0 0.0
    %446 = vmatmul.mubr.f32.gmra.mrb[0].mxu0 %v370
    %v447 = vpop.f32.mrb[0].mxu0
    %v448 = vadd.f32 %v146, %v447
    %v449 = vpop.f32.mrb[0].mxu0
    %450 = vdwg.mxu0
    %451 = vrot.lane.b32.xlu0 %v269, 96
    %v452 = vpop.permute.xlu0 %451
    %453 = vrot.lane.b32.xlu0 %v271, 96
    %v454 = vpop.permute.xlu0 %453
    %v455 = vsel %vm280, %v269, 0
    %v457 = vsel %vm280, %v271, 0
    %v459 = vsel %vm280, %v452, 0
    %v461 = vsel %vm280, %v454, 0
    %463 = vmatprep.subr.mxu0 0.0
    %464 = vmatpush1.xpose.msra.mxu0 %v459
    %465 = vmatprep.subr.mxu0 0.0
    %466 = vmatpush1.xpose.msra.mxu0 %v461
    %467 = vmatprep.subr.mxu0 0.0
    %468 = vmatpush1.xpose.msra.mxu0 0.0
    %469 = vmatprep.subr.mxu0 0.0
    %470 = vmatpush1.xpose.msra.mxu0 0.0
    %471 = vmatprep.subr.mxu0 0.0
    %472 = vmatpush1.xpose.msra.mxu0 0.0
    %473 = vmatprep.subr.mxu0 0.0
    %474 = vmatpush1.xpose.msra.mxu0 0.0
    %475 = vmatprep.subr.mxu0 0.0
    %476 = vmatpush1.xpose.msra.mxu0 0.0
    %477 = vmatprep.subr.mxu0 0.0
    %478 = vmatpush1.xpose.msra.mxu0 0.0
    %479 = vmatprep.subr.mxu0 0.0
    %480 = vmatpush1.xpose.msra.mxu0 0.0
    %481 = vmatprep.subr.mxu0 0.0
    %482 = vmatpush1.xpose.msra.mxu0 0.0
    %483 = vmatprep.subr.mxu0 0.0
    %484 = vmatpush1.xpose.msra.mxu0 0.0
    %485 = vmatprep.subr.mxu0 0.0
    %486 = vmatpush1.xpose.msra.mxu0 0.0
    %487 = vmatprep.subr.mxu0 0.0
    %488 = vmatpush1.xpose.msra.mxu0 0.0
    %489 = vmatprep.subr.mxu0 0.0
    %490 = vmatpush1.xpose.msra.mxu0 0.0
    %491 = vmatprep.subr.mxu0 0.0
    %492 = vmatpush1.xpose.msra.mxu0 0.0
    %493 = vmatprep.subr.mxu0 0.0
    %494 = vmatpush1.xpose.msra.mxu0 0.0
    %495 = vmatprep.subr.mxu0 0.0
    %496 = vmatpush1.xpose.msra.mxu0 0.0
    %497 = vmatprep.subr.mxu0 0.0
    %498 = vmatpush1.xpose.msra.mxu0 0.0
    %499 = vmatprep.subr.mxu0 0.0
    %500 = vmatpush1.xpose.msra.mxu0 0.0
    %501 = vmatprep.subr.mxu0 0.0
    %502 = vmatpush1.xpose.msra.mxu0 0.0
    %503 = vmatprep.subr.mxu0 0.0
    %504 = vmatpush1.xpose.msra.mxu0 0.0
    %505 = vmatprep.subr.mxu0 0.0
    %506 = vmatpush1.xpose.msra.mxu0 0.0
    %507 = vmatprep.subr.mxu0 0.0
    %508 = vmatpush1.xpose.msra.mxu0 0.0
    %509 = vmatprep.subr.mxu0 0.0
    %510 = vmatpush1.xpose.msra.mxu0 0.0
    %511 = vmatprep.subr.mxu0 0.0
    %512 = vmatpush1.xpose.msra.mxu0 0.0
    %513 = vmatprep.subr.mxu0 0.0
    %514 = vmatpush1.xpose.msra.mxu0 0.0
    %515 = vmatprep.subr.mxu0 0.0
    %516 = vmatpush1.xpose.msra.mxu0 0.0
    %517 = vmatprep.subr.mxu0 0.0
    %518 = vmatpush1.xpose.msra.mxu0 0.0
    %519 = vmatprep.subr.mxu0 0.0
    %520 = vmatpush1.xpose.msra.mxu0 0.0
    %521 = vmatprep.subr.mxu0 0.0
    %522 = vmatpush1.xpose.msra.mxu0 0.0
    %523 = vmatprep.subr.mxu0 0.0
    %524 = vmatpush1.xpose.msra.mxu0 0.0
    %525 = vmatprep.subr.mxu0 0.0
    %526 = vmatpush1.xpose.msra.mxu0 0.0
    %527 = vmatprep.mubr.f32.mxu0 0.0
    %528 = vmatmul.mubr.f32.gmra.mrb[0].mxu0 %v455
    %v529 = vpop.f32.mrb[0].mxu0
    %v530 = vadd.f32 %v147, %v529
    %v531 = vpop.f32.mrb[0].mxu0
    %532 = vmatprep.mubr.f32.mxu0 0.0
    %533 = vmatmul.mubr.f32.gmra.mrb[0].mxu0 %v457
    %v534 = vpop.f32.mrb[0].mxu0
    %v535 = vadd.f32 %v148, %v534
    %v536 = vpop.f32.mrb[0].mxu0
    %537 = vdwg.mxu0
    %538 = vrot.lane.b32.xlu0 %v273, 96
    %v539 = vpop.permute.xlu0 %538
    %540 = vrot.lane.b32.xlu0 %v275, 96
    %v541 = vpop.permute.xlu0 %540
    %v542 = vsel %vm280, %v273, 0
    %v544 = vsel %vm280, %v275, 0
    %v546 = vsel %vm280, %v539, 0
    %v548 = vsel %vm280, %v541, 0
    %550 = vmatprep.subr.mxu0 0.0
    %551 = vmatpush1.xpose.msra.mxu0 %v546
    %552 = vmatprep.subr.mxu0 0.0
    %553 = vmatpush1.xpose.msra.mxu0 %v548
    %554 = vmatprep.subr.mxu0 0.0
    %555 = vmatpush1.xpose.msra.mxu0 0.0
    %556 = vmatprep.subr.mxu0 0.0
    %557 = vmatpush1.xpose.msra.mxu0 0.0
    %558 = vmatprep.subr.mxu0 0.0
    %559 = vmatpush1.xpose.msra.mxu0 0.0
    %560 = vmatprep.subr.mxu0 0.0
    %561 = vmatpush1.xpose.msra.mxu0 0.0
    %562 = vmatprep.subr.mxu0 0.0
    %563 = vmatpush1.xpose.msra.mxu0 0.0
    %564 = vmatprep.subr.mxu0 0.0
    %565 = vmatpush1.xpose.msra.mxu0 0.0
    %566 = vmatprep.subr.mxu0 0.0
    %567 = vmatpush1.xpose.msra.mxu0 0.0
    %568 = vmatprep.subr.mxu0 0.0
    %569 = vmatpush1.xpose.msra.mxu0 0.0
    %570 = vmatprep.subr.mxu0 0.0
    %571 = vmatpush1.xpose.msra.mxu0 0.0
    %572 = vmatprep.subr.mxu0 0.0
    %573 = vmatpush1.xpose.msra.mxu0 0.0
    %574 = vmatprep.subr.mxu0 0.0
    %575 = vmatpush1.xpose.msra.mxu0 0.0
    %576 = vmatprep.subr.mxu0 0.0
    %577 = vmatpush1.xpose.msra.mxu0 0.0
    %578 = vmatprep.subr.mxu0 0.0
    %579 = vmatpush1.xpose.msra.mxu0 0.0
    %580 = vmatprep.subr.mxu0 0.0
    %581 = vmatpush1.xpose.msra.mxu0 0.0
    %582 = vmatprep.subr.mxu0 0.0
    %583 = vmatpush1.xpose.msra.mxu0 0.0
    %584 = vmatprep.subr.mxu0 0.0
    %585 = vmatpush1.xpose.msra.mxu0 0.0
    %586 = vmatprep.subr.mxu0 0.0
    %587 = vmatpush1.xpose.msra.mxu0 0.0
    %588 = vmatprep.subr.mxu0 0.0
    %589 = vmatpush1.xpose.msra.mxu0 0.0
    %590 = vmatprep.subr.mxu0 0.0
    %591 = vmatpush1.xpose.msra.mxu0 0.0
    %592 = vmatprep.subr.mxu0 0.0
    %593 = vmatpush1.xpose.msra.mxu0 0.0
    %594 = vmatprep.subr.mxu0 0.0
    %595 = vmatpush1.xpose.msra.mxu0 0.0
    %596 = vmatprep.subr.mxu0 0.0
    %597 = vmatpush1.xpose.msra.mxu0 0.0
    %598 = vmatprep.subr.mxu0 0.0
    %599 = vmatpush1.xpose.msra.mxu0 0.0
    %600 = vmatprep.subr.mxu0 0.0
    %601 = vmatpush1.xpose.msra.mxu0 0.0
    %602 = vmatprep.subr.mxu0 0.0
    %603 = vmatpush1.xpose.msra.mxu0 0.0
    %604 = vmatprep.subr.mxu0 0.0
    %605 = vmatpush1.xpose.msra.mxu0 0.0
    %606 = vmatprep.subr.mxu0 0.0
    %607 = vmatpush1.xpose.msra.mxu0 0.0
    %608 = vmatprep.subr.mxu0 0.0
    %609 = vmatpush1.xpose.msra.mxu0 0.0
    %610 = vmatprep.subr.mxu0 0.0
    %611 = vmatpush1.xpose.msra.mxu0 0.0
    %612 = vmatprep.subr.mxu0 0.0
    %613 = vmatpush1.xpose.msra.mxu0 0.0
    %614 = vmatprep.mubr.f32.mxu0 0.0
    %615 = vmatmul.mubr.f32.gmra.mrb[0].mxu0 %v542
    %v616 = vpop.f32.mrb[0].mxu0
    %v617 = vadd.f32 %v149, %v616
    %v618 = vpop.f32.mrb[0].mxu0
    %619 = vmatprep.mubr.f32.mxu0 0.0
    %620 = vmatmul.mubr.f32.gmra.mrb[0].mxu0 %v544
    %v621 = vpop.f32.mrb[0].mxu0
    %v622 = vadd.f32 %v150, %v621
    %v623 = vpop.f32.mrb[0].mxu0
    %624 = vdwg.mxu0
    %vm625 = vcmask 130048
    %v626 = vsel %vm625, %v356, -inf
    %627 = vmax.xlane.f32.xlu0 %v626
    %v628 = vpop.xlane.xlu0 %627
    %v629 = vsel %vm625, %v361, -inf
    %630 = vmax.xlane.f32.xlu0 %v629
    %v631 = vpop.xlane.xlu0 %630
    %v632 = vsel %vm625, %v443, -inf
    %633 = vmax.xlane.f32.xlu0 %v632
    %v634 = vpop.xlane.xlu0 %633
    %v635 = vsel %vm625, %v448, -inf
    %636 = vmax.xlane.f32.xlu0 %v635
    %v637 = vpop.xlane.xlu0 %636
    %v638 = vsel %vm625, %v530, -inf
    %639 = vmax.xlane.f32.xlu0 %v638
    %v640 = vpop.xlane.xlu0 %639
    %v641 = vsel %vm625, %v535, -inf
    %642 = vmax.xlane.f32.xlu0 %v641
    %v643 = vpop.xlane.xlu0 %642
    %v644 = vsel %vm625, %v617, -inf
    %645 = vmax.xlane.f32.xlu0 %v644
    %v646 = vpop.xlane.xlu0 %645
    %v647 = vsel %vm625, %v622, -inf
    %648 = vmax.xlane.f32.xlu0 %v647
    %v649 = vpop.xlane.xlu0 %648
    %v650 = vsub.f32 %v356, %v628
    %v651 = vsub.f32 %v361, %v631
    %v652 = vsub.f32 %v443, %v634
    %v653 = vsub.f32 %v448, %v637
    %v654 = vsub.f32 %v530, %v640
    %v655 = vsub.f32 %v535, %v643
    %v656 = vsub.f32 %v617, %v646
    %v657 = vsub.f32 %v622, %v649
    %v658 = vmul.f32 %v650, 1.442695
    %v659 = vpow.pop %v658
    %v660 = vmul.f32 %v651, 1.442695
    %v661 = vpow.pop %v660
    %v662 = vmul.f32 %v652, 1.442695
    %v663 = vpow.pop %v662
    %v664 = vmul.f32 %v653, 1.442695
    %v665 = vpow.pop %v664
    %v666 = vmul.f32 %v654, 1.442695
    %v667 = vpow.pop %v666
    %v668 = vmul.f32 %v655, 1.442695
    %v669 = vpow.pop %v668
    %v670 = vmul.f32 %v656, 1.442695
    %v671 = vpow.pop %v670
    %v672 = vmul.f32 %v657, 1.442695
    %v673 = vpow.pop %v672
    %v674 = vsel %vm625, %v659, 0.0
    %675 = vadd.xlane.f32.xlu0 %v674
    %v676 = vpop.xlane.xlu0 %675
    %v677 = vsel %vm625, %v661, 0.0
    %678 = vadd.xlane.f32.xlu0 %v677
    %v679 = vpop.xlane.xlu0 %678
    %v680 = vsel %vm625, %v663, 0.0
    %681 = vadd.xlane.f32.xlu0 %v680
    %v682 = vpop.xlane.xlu0 %681
    %v683 = vsel %vm625, %v665, 0.0
    %684 = vadd.xlane.f32.xlu0 %v683
    %v685 = vpop.xlane.xlu0 %684
    %v686 = vsel %vm625, %v667, 0.0
    %687 = vadd.xlane.f32.xlu0 %v686
    %v688 = vpop.xlane.xlu0 %687
    %v689 = vsel %vm625, %v669, 0.0
    %690 = vadd.xlane.f32.xlu0 %v689
    %v691 = vpop.xlane.xlu0 %690
    %v692 = vsel %vm625, %v671, 0.0
    %693 = vadd.xlane.f32.xlu0 %v692
    %v694 = vpop.xlane.xlu0 %693
    %v695 = vsel %vm625, %v673, 0.0
    %696 = vadd.xlane.f32.xlu0 %v695
    %v697 = vpop.xlane.xlu0 %696
    %v698 = vrcp.pop %v676
    %v699 = vrcp.pop %v679
    %v700 = vrcp.pop %v682
    %v701 = vrcp.pop %v685
    %v702 = vrcp.pop %v688
    %v703 = vrcp.pop %v691
    %v704 = vrcp.pop %v694
    %v705 = vrcp.pop %v697
    %v706 = vmul.f32 %v659, %v698
    %v707 = vmul.f32 %v661, %v699
    %v708 = vmul.f32 %v663, %v700
    %v709 = vmul.f32 %v665, %v701
    %v710 = vmul.f32 %v667, %v702
    %v711 = vmul.f32 %v669, %v703
    %v712 = vmul.f32 %v671, %v704
    %v713 = vmul.f32 %v673, %v705
    %714 = vrot.lane.b32.xlu0 %v254, 64
    %v715 = vpop.permute.xlu0 %714
    %716 = vrot.lane.b32.xlu0 %v259, 64
    %v717 = vpop.permute.xlu0 %716
    %v721 = vsel %vm625, %v706, 0
    %v724 = vsel %vm625, %v707, 0
    %726 = vmatprep.subr.mxu0 0.0
    %727 = vmatpush1.msra.mxu0 %v715
    %728 = vmatprep.subr.mxu0 0.0
    %729 = vmatpush1.msra.mxu0 %v717
    %730 = vmatprep.subr.mxu0 0.0
    %731 = vmatpush1.msra.mxu0 0.0
    %732 = vmatprep.subr.mxu0 0.0
    %733 = vmatpush1.msra.mxu0 0.0
    %734 = vmatprep.subr.mxu0 0.0
    %735 = vmatpush1.msra.mxu0 0.0
    %736 = vmatprep.subr.mxu0 0.0
    %737 = vmatpush1.msra.mxu0 0.0
    %738 = vmatprep.subr.mxu0 0.0
    %739 = vmatpush1.msra.mxu0 0.0
    %740 = vmatprep.subr.mxu0 0.0
    %741 = vmatpush1.msra.mxu0 0.0
    %742 = vmatprep.subr.mxu0 0.0
    %743 = vmatpush1.msra.mxu0 0.0
    %744 = vmatprep.subr.mxu0 0.0
    %745 = vmatpush1.msra.mxu0 0.0
    %746 = vmatprep.subr.mxu0 0.0
    %747 = vmatpush1.msra.mxu0 0.0
    %748 = vmatprep.subr.mxu0 0.0
    %749 = vmatpush1.msra.mxu0 0.0
    %750 = vmatprep.subr.mxu0 0.0
    %751 = vmatpush1.msra.mxu0 0.0
    %752 = vmatprep.subr.mxu0 0.0
    %753 = vmatpush1.msra.mxu0 0.0
    %754 = vmatprep.subr.mxu0 0.0
    %755 = vmatpush1.msra.mxu0 0.0
    %756 = vmatprep.subr.mxu0 0.0
    %757 = vmatpush1.msra.mxu0 0.0
    %758 = vmatprep.subr.mxu0 0.0
    %759 = vmatpush1.msra.mxu0 0.0
    %760 = vmatprep.subr.mxu0 0.0
    %761 = vmatpush1.msra.mxu0 0.0
    %762 = vmatprep.subr.mxu0 0.0
    %763 = vmatpush1.msra.mxu0 0.0
    %764 = vmatprep.subr.mxu0 0.0
    %765 = vmatpush1.msra.mxu0 0.0
    %766 = vmatprep.subr.mxu0 0.0
    %767 = vmatpush1.msra.mxu0 0.0
    %768 = vmatprep.subr.mxu0 0.0
    %769 = vmatpush1.msra.mxu0 0.0
    %770 = vmatprep.subr.mxu0 0.0
    %771 = vmatpush1.msra.mxu0 0.0
    %772 = vmatprep.subr.mxu0 0.0
    %773 = vmatpush1.msra.mxu0 0.0
    %774 = vmatprep.subr.mxu0 0.0
    %775 = vmatpush1.msra.mxu0 0.0
    %776 = vmatprep.subr.mxu0 0.0
    %777 = vmatpush1.msra.mxu0 0.0
    %778 = vmatprep.subr.mxu0 0.0
    %779 = vmatpush1.msra.mxu0 0.0
    %780 = vmatprep.subr.mxu0 0.0
    %781 = vmatpush1.msra.mxu0 0.0
    %782 = vmatprep.subr.mxu0 0.0
    %783 = vmatpush1.msra.mxu0 0.0
    %784 = vmatprep.subr.mxu0 0.0
    %785 = vmatpush1.msra.mxu0 0.0
    %786 = vmatprep.subr.mxu0 0.0
    %787 = vmatpush1.msra.mxu0 0.0
    %788 = vmatprep.subr.mxu0 0.0
    %789 = vmatpush1.msra.mxu0 0.0
    %790 = vmatprep.mubr.f32.mxu0 0.0
    %791 = vmatmul.mubr.f32.gmra.mrb[0].mxu0 %v721
    %v792 = vpop.f32.mrb[0].mxu0
    %v793 = vadd.f32 0.0, %v792
    %v794 = vpop.f32.mrb[0].mxu0
    %795 = vmatprep.mubr.f32.mxu0 0.0
    %796 = vmatmul.mubr.f32.gmra.mrb[0].mxu0 %v724
    %v797 = vpop.f32.mrb[0].mxu0
    %v798 = vadd.f32 0.0, %v797
    %v799 = vpop.f32.mrb[0].mxu0
    %800 = vdwg.mxu0
    %801 = vrot.lane.b32.xlu0 %v265, 64
    %v802 = vpop.permute.xlu0 %801
    %803 = vrot.lane.b32.xlu0 %v267, 64
    %v804 = vpop.permute.xlu0 %803
    %v808 = vsel %vm625, %v708, 0
    %v811 = vsel %vm625, %v709, 0
    %813 = vmatprep.subr.mxu0 0.0
    %814 = vmatpush1.msra.mxu0 %v802
    %815 = vmatprep.subr.mxu0 0.0
    %816 = vmatpush1.msra.mxu0 %v804
    %817 = vmatprep.subr.mxu0 0.0
    %818 = vmatpush1.msra.mxu0 0.0
    %819 = vmatprep.subr.mxu0 0.0
    %820 = vmatpush1.msra.mxu0 0.0
    %821 = vmatprep.subr.mxu0 0.0
    %822 = vmatpush1.msra.mxu0 0.0
    %823 = vmatprep.subr.mxu0 0.0
    %824 = vmatpush1.msra.mxu0 0.0
    %825 = vmatprep.subr.mxu0 0.0
    %826 = vmatpush1.msra.mxu0 0.0
    %827 = vmatprep.subr.mxu0 0.0
    %828 = vmatpush1.msra.mxu0 0.0
    %829 = vmatprep.subr.mxu0 0.0
    %830 = vmatpush1.msra.mxu0 0.0
    %831 = vmatprep.subr.mxu0 0.0
    %832 = vmatpush1.msra.mxu0 0.0
    %833 = vmatprep.subr.mxu0 0.0
    %834 = vmatpush1.msra.mxu0 0.0
    %835 = vmatprep.subr.mxu0 0.0
    %836 = vmatpush1.msra.mxu0 0.0
    %837 = vmatprep.subr.mxu0 0.0
    %838 = vmatpush1.msra.mxu0 0.0
    %839 = vmatprep.subr.mxu0 0.0
    %840 = vmatpush1.msra.mxu0 0.0
    %841 = vmatprep.subr.mxu0 0.0
    %842 = vmatpush1.msra.mxu0 0.0
    %843 = vmatprep.subr.mxu0 0.0
    %844 = vmatpush1.msra.mxu0 0.0
    %845 = vmatprep.subr.mxu0 0.0
    %846 = vmatpush1.msra.mxu0 0.0
    %847 = vmatprep.subr.mxu0 0.0
    %848 = vmatpush1.msra.mxu0 0.0
    %849 = vmatprep.subr.mxu0 0.0
    %850 = vmatpush1.msra.mxu0 0.0
    %851 = vmatprep.subr.mxu0 0.0
    %852 = vmatpush1.msra.mxu0 0.0
    %853 = vmatprep.subr.mxu0 0.0
    %854 = vmatpush1.msra.mxu0 0.0
    %855 = vmatprep.subr.mxu0 0.0
    %856 = vmatpush1.msra.mxu0 0.0
    %857 = vmatprep.subr.mxu0 0.0
    %858 = vmatpush1.msra.mxu0 0.0
    %859 = vmatprep.subr.mxu0 0.0
    %860 = vmatpush1.msra.mxu0 0.0
    %861 = vmatprep.subr.mxu0 0.0
    %862 = vmatpush1.msra.mxu0 0.0
    %863 = vmatprep.subr.mxu0 0.0
    %864 = vmatpush1.msra.mxu0 0.0
    %865 = vmatprep.subr.mxu0 0.0
    %866 = vmatpush1.msra.mxu0 0.0
    %867 = vmatprep.subr.mxu0 0.0
    %868 = vmatpush1.msra.mxu0 0.0
    %869 = vmatprep.subr.mxu0 0.0
    %870 = vmatpush1.msra.mxu0 0.0
    %871 = vmatprep.subr.mxu0 0.0
    %872 = vmatpush1.msra.mxu0 0.0
    %873 = vmatprep.subr.mxu0 0.0
    %874 = vmatpush1.msra.mxu0 0.0
    %875 = vmatprep.subr.mxu0 0.0
    %876 = vmatpush1.msra.mxu0 0.0
    %877 = vmatprep.mubr.f32.mxu0 0.0
    %878 = vmatmul.mubr.f32.gmra.mrb[0].mxu0 %v808
    %v879 = vpop.f32.mrb[0].mxu0
    %v880 = vadd.f32 0.0, %v879
    %v881 = vpop.f32.mrb[0].mxu0
    %882 = vmatprep.mubr.f32.mxu0 0.0
    %883 = vmatmul.mubr.f32.gmra.mrb[0].mxu0 %v811
    %v884 = vpop.f32.mrb[0].mxu0
    %v885 = vadd.f32 0.0, %v884
    %v886 = vpop.f32.mrb[0].mxu0
    %887 = vdwg.mxu0
    %888 = vrot.lane.b32.xlu0 %v269, 64
    %v889 = vpop.permute.xlu0 %888
    %890 = vrot.lane.b32.xlu0 %v271, 64
    %v891 = vpop.permute.xlu0 %890
    %v895 = vsel %vm625, %v710, 0
    %v898 = vsel %vm625, %v711, 0
    %900 = vmatprep.subr.mxu0 0.0
    %901 = vmatpush1.msra.mxu0 %v889
    %902 = vmatprep.subr.mxu0 0.0
    %903 = vmatpush1.msra.mxu0 %v891
    %904 = vmatprep.subr.mxu0 0.0
    %905 = vmatpush1.msra.mxu0 0.0
    %906 = vmatprep.subr.mxu0 0.0
    %907 = vmatpush1.msra.mxu0 0.0
    %908 = vmatprep.subr.mxu0 0.0
    %909 = vmatpush1.msra.mxu0 0.0
    %910 = vmatprep.subr.mxu0 0.0
    %911 = vmatpush1.msra.mxu0 0.0
    %912 = vmatprep.subr.mxu0 0.0
    %913 = vmatpush1.msra.mxu0 0.0
    %914 = vmatprep.subr.mxu0 0.0
    %915 = vmatpush1.msra.mxu0 0.0
    %916 = vmatprep.subr.mxu0 0.0
    %917 = vmatpush1.msra.mxu0 0.0
    %918 = vmatprep.subr.mxu0 0.0
    %919 = vmatpush1.msra.mxu0 0.0
    %920 = vmatprep.subr.mxu0 0.0
    %921 = vmatpush1.msra.mxu0 0.0
    %922 = vmatprep.subr.mxu0 0.0
    %923 = vmatpush1.msra.mxu0 0.0
    %924 = vmatprep.subr.mxu0 0.0
    %925 = vmatpush1.msra.mxu0 0.0
    %926 = vmatprep.subr.mxu0 0.0
    %927 = vmatpush1.msra.mxu0 0.0
    %928 = vmatprep.subr.mxu0 0.0
    %929 = vmatpush1.msra.mxu0 0.0
    %930 = vmatprep.subr.mxu0 0.0
    %931 = vmatpush1.msra.mxu0 0.0
    %932 = vmatprep.subr.mxu0 0.0
    %933 = vmatpush1.msra.mxu0 0.0
    %934 = vmatprep.subr.mxu0 0.0
    %935 = vmatpush1.msra.mxu0 0.0
    %936 = vmatprep.subr.mxu0 0.0
    %937 = vmatpush1.msra.mxu0 0.0
    %938 = vmatprep.subr.mxu0 0.0
    %939 = vmatpush1.msra.mxu0 0.0
    %940 = vmatprep.subr.mxu0 0.0
    %941 = vmatpush1.msra.mxu0 0.0
    %942 = vmatprep.subr.mxu0 0.0
    %943 = vmatpush1.msra.mxu0 0.0
    %944 = vmatprep.subr.mxu0 0.0
    %945 = vmatpush1.msra.mxu0 0.0
    %946 = vmatprep.subr.mxu0 0.0
    %947 = vmatpush1.msra.mxu0 0.0
    %948 = vmatprep.subr.mxu0 0.0
    %949 = vmatpush1.msra.mxu0 0.0
    %950 = vmatprep.subr.mxu0 0.0
    %951 = vmatpush1.msra.mxu0 0.0
    %952 = vmatprep.subr.mxu0 0.0
    %953 = vmatpush1.msra.mxu0 0.0
    %954 = vmatprep.subr.mxu0 0.0
    %955 = vmatpush1.msra.mxu0 0.0
    %956 = vmatprep.subr.mxu0 0.0
    %957 = vmatpush1.msra.mxu0 0.0
    %958 = vmatprep.subr.mxu0 0.0
    %959 = vmatpush1.msra.mxu0 0.0
    %960 = vmatprep.subr.mxu0 0.0
    %961 = vmatpush1.msra.mxu0 0.0
    %962 = vmatprep.subr.mxu0 0.0
    %963 = vmatpush1.msra.mxu0 0.0
    %964 = vmatprep.mubr.f32.mxu0 0.0
    %965 = vmatmul.mubr.f32.gmra.mrb[0].mxu0 %v895
    %v966 = vpop.f32.mrb[0].mxu0
    %v967 = vadd.f32 0.0, %v966
    %v968 = vpop.f32.mrb[0].mxu0
    %969 = vmatprep.mubr.f32.mxu0 0.0
    %970 = vmatmul.mubr.f32.gmra.mrb[0].mxu0 %v898
    %v971 = vpop.f32.mrb[0].mxu0
    %v972 = vadd.f32 0.0, %v971
    %v973 = vpop.f32.mrb[0].mxu0
    %974 = vdwg.mxu0
    %975 = vrot.lane.b32.xlu0 %v273, 64
    %v976 = vpop.permute.xlu0 %975
    %977 = vrot.lane.b32.xlu0 %v275, 64
    %v978 = vpop.permute.xlu0 %977
    %v982 = vsel %vm625, %v712, 0
    %v985 = vsel %vm625, %v713, 0
    %987 = vmatprep.subr.mxu0 0.0
    %988 = vmatpush1.msra.mxu0 %v976
    %989 = vmatprep.subr.mxu0 0.0
    %990 = vmatpush1.msra.mxu0 %v978
    %991 = vmatprep.subr.mxu0 0.0
    %992 = vmatpush1.msra.mxu0 0.0
    %993 = vmatprep.subr.mxu0 0.0
    %994 = vmatpush1.msra.mxu0 0.0
    %995 = vmatprep.subr.mxu0 0.0
    %996 = vmatpush1.msra.mxu0 0.0
    %997 = vmatprep.subr.mxu0 0.0
    %998 = vmatpush1.msra.mxu0 0.0
    %999 = vmatprep.subr.mxu0 0.0
    %1000 = vmatpush1.msra.mxu0 0.0
    %1001 = vmatprep.subr.mxu0 0.0
    %1002 = vmatpush1.msra.mxu0 0.0
    %1003 = vmatprep.subr.mxu0 0.0
    %1004 = vmatpush1.msra.mxu0 0.0
    %1005 = vmatprep.subr.mxu0 0.0
    %1006 = vmatpush1.msra.mxu0 0.0
    %1007 = vmatprep.subr.mxu0 0.0
    %1008 = vmatpush1.msra.mxu0 0.0
    %1009 = vmatprep.subr.mxu0 0.0
    %1010 = vmatpush1.msra.mxu0 0.0
    %1011 = vmatprep.subr.mxu0 0.0
    %1012 = vmatpush1.msra.mxu0 0.0
    %1013 = vmatprep.subr.mxu0 0.0
    %1014 = vmatpush1.msra.mxu0 0.0
    %1015 = vmatprep.subr.mxu0 0.0
    %1016 = vmatpush1.msra.mxu0 0.0
    %1017 = vmatprep.subr.mxu0 0.0
    %1018 = vmatpush1.msra.mxu0 0.0
    %1019 = vmatprep.subr.mxu0 0.0
    %1020 = vmatpush1.msra.mxu0 0.0
    %1021 = vmatprep.subr.mxu0 0.0
    %1022 = vmatpush1.msra.mxu0 0.0
    %1023 = vmatprep.subr.mxu0 0.0
    %1024 = vmatpush1.msra.mxu0 0.0
    %1025 = vmatprep.subr.mxu0 0.0
    %1026 = vmatpush1.msra.mxu0 0.0
    %1027 = vmatprep.subr.mxu0 0.0
    %1028 = vmatpush1.msra.mxu0 0.0
    %1029 = vmatprep.subr.mxu0 0.0
    %1030 = vmatpush1.msra.mxu0 0.0
    %1031 = vmatprep.subr.mxu0 0.0
    %1032 = vmatpush1.msra.mxu0 0.0
    %1033 = vmatprep.subr.mxu0 0.0
    %1034 = vmatpush1.msra.mxu0 0.0
    %1035 = vmatprep.subr.mxu0 0.0
    %1036 = vmatpush1.msra.mxu0 0.0
    %1037 = vmatprep.subr.mxu0 0.0
    %1038 = vmatpush1.msra.mxu0 0.0
    %1039 = vmatprep.subr.mxu0 0.0
    %1040 = vmatpush1.msra.mxu0 0.0
    %1041 = vmatprep.subr.mxu0 0.0
    %1042 = vmatpush1.msra.mxu0 0.0
    %1043 = vmatprep.subr.mxu0 0.0
    %1044 = vmatpush1.msra.mxu0 0.0
    %1045 = vmatprep.subr.mxu0 0.0
    %1046 = vmatpush1.msra.mxu0 0.0
    %1047 = vmatprep.subr.mxu0 0.0
    %1048 = vmatpush1.msra.mxu0 0.0
    %1049 = vmatprep.subr.mxu0 0.0
    %1050 = vmatpush1.msra.mxu0 0.0
    %1051 = vmatprep.mubr.f32.mxu0 0.0
    %1052 = vmatmul.mubr.f32.gmra.mrb[0].mxu0 %v982
    %v1053 = vpop.f32.mrb[0].mxu0
    %v1054 = vadd.f32 0.0, %v1053
    %v1055 = vpop.f32.mrb[0].mxu0
    %1056 = vmatprep.mubr.f32.mxu0 0.0
    %1057 = vmatmul.mubr.f32.gmra.mrb[0].mxu0 %v985
    %v1058 = vpop.f32.mrb[0].mxu0
    %v1059 = vadd.f32 0.0, %v1058
    %v1060 = vpop.f32.mrb[0].mxu0
    %1061 = vdwg.mxu0
    %1064 = vrot.lane.b32.xlu0 %v880, 8
    %v1065 = vpop.permute.xlu0 %1064
    %1066 = vrot.lane.b32.xlu0 %v885, 8
    %v1067 = vpop.permute.xlu0 %1066
    %1072 = vrot.lane.b32.xlu0 %v967, 16
    %v1073 = vpop.permute.xlu0 %1072
    %1074 = vrot.lane.b32.xlu0 %v972, 16
    %v1075 = vpop.permute.xlu0 %1074
    %1080 = vrot.lane.b32.xlu0 %v1054, 24
    %v1081 = vpop.permute.xlu0 %1080
    %1082 = vrot.lane.b32.xlu0 %v1059, 24
    %v1083 = vpop.permute.xlu0 %1082
    %v1086 = vsel %vm280, %v793, %v1065
    %v1087 = vsel %vm280, %v798, %v1067
    %v1088 = vsel %vm625, %v1086, %v1073
    %v1089 = vsel %vm625, %v1087, %v1075
    %vm1090 = vcmask 195584
    %v1091 = vsel %vm1090, %v1088, %v1081
    %v1092 = vsel %vm1090, %v1089, %v1083
    %v1093 = vld [vmem:[%s5] sm:$0xff]
    %v1094 = vld [vmem:[%s5 + $0x8] sm:$0xff]
    %v1095 = vld [vmem:[%s5 + $0x10] sm:$0xff]
    %v1096 = vld [vmem:[%s5 + $0x18] sm:$0xff]
    %v1098 = vsel %vm140, %v1091, 0
    %v1101 = vsel %vm140, %v1092, 0
    %1103 = vmatprep.subr.mxu0 0.0
    %1104 = vmatpush1.msra.mxu0 %v1093
    %1105 = vmatprep.subr.mxu0 0.0
    %1106 = vmatpush1.msra.mxu0 %v1094
    %1107 = vmatprep.subr.mxu0 0.0
    %1108 = vmatpush1.msra.mxu0 %v1095
    %1109 = vmatprep.subr.mxu0 0.0
    %1110 = vmatpush1.msra.mxu0 %v1096
    %1111 = vmatprep.subr.mxu0 0.0
    %1112 = vmatpush1.msra.mxu0 0.0
    %1113 = vmatprep.subr.mxu0 0.0
    %1114 = vmatpush1.msra.mxu0 0.0
    %1115 = vmatprep.subr.mxu0 0.0
    %1116 = vmatpush1.msra.mxu0 0.0
    %1117 = vmatprep.subr.mxu0 0.0
    %1118 = vmatpush1.msra.mxu0 0.0
    %1119 = vmatprep.subr.mxu0 0.0
    %1120 = vmatpush1.msra.mxu0 0.0
    %1121 = vmatprep.subr.mxu0 0.0
    %1122 = vmatpush1.msra.mxu0 0.0
    %1123 = vmatprep.subr.mxu0 0.0
    %1124 = vmatpush1.msra.mxu0 0.0
    %1125 = vmatprep.subr.mxu0 0.0
    %1126 = vmatpush1.msra.mxu0 0.0
    %1127 = vmatprep.subr.mxu0 0.0
    %1128 = vmatpush1.msra.mxu0 0.0
    %1129 = vmatprep.subr.mxu0 0.0
    %1130 = vmatpush1.msra.mxu0 0.0
    %1131 = vmatprep.subr.mxu0 0.0
    %1132 = vmatpush1.msra.mxu0 0.0
    %1133 = vmatprep.subr.mxu0 0.0
    %1134 = vmatpush1.msra.mxu0 0.0
    %1135 = vmatprep.subr.mxu0 0.0
    %1136 = vmatpush1.msra.mxu0 0.0
    %1137 = vmatprep.subr.mxu0 0.0
    %1138 = vmatpush1.msra.mxu0 0.0
    %1139 = vmatprep.subr.mxu0 0.0
    %1140 = vmatpush1.msra.mxu0 0.0
    %1141 = vmatprep.subr.mxu0 0.0
    %1142 = vmatpush1.msra.mxu0 0.0
    %1143 = vmatprep.subr.mxu0 0.0
    %1144 = vmatpush1.msra.mxu0 0.0
    %1145 = vmatprep.subr.mxu0 0.0
    %1146 = vmatpush1.msra.mxu0 0.0
    %1147 = vmatprep.subr.mxu0 0.0
    %1148 = vmatpush1.msra.mxu0 0.0
    %1149 = vmatprep.subr.mxu0 0.0
    %1150 = vmatpush1.msra.mxu0 0.0
    %1151 = vmatprep.subr.mxu0 0.0
    %1152 = vmatpush1.msra.mxu0 0.0
    %1153 = vmatprep.subr.mxu0 0.0
    %1154 = vmatpush1.msra.mxu0 0.0
    %1155 = vmatprep.subr.mxu0 0.0
    %1156 = vmatpush1.msra.mxu0 0.0
    %1157 = vmatprep.subr.mxu0 0.0
    %1158 = vmatpush1.msra.mxu0 0.0
    %1159 = vmatprep.subr.mxu0 0.0
    %1160 = vmatpush1.msra.mxu0 0.0
    %1161 = vmatprep.subr.mxu0 0.0
    %1162 = vmatpush1.msra.mxu0 0.0
    %1163 = vmatprep.subr.mxu0 0.0
    %1164 = vmatpush1.msra.mxu0 0.0
    %1165 = vmatprep.subr.mxu0 0.0
    %1166 = vmatpush1.msra.mxu0 0.0
    %1167 = vmatprep.mubr.f32.mxu0 0.0
    %1168 = vmatmul.mubr.f32.gmra.mrb[0].mxu0 %v1098
    %v1169 = vpop.f32.mrb[0].mxu0
    %v1170 = vadd.f32 0.0, %v1169
    %v1171 = vpop.f32.mrb[0].mxu0
    %1172 = vmatprep.mubr.f32.mxu0 0.0
    %1173 = vmatmul.mubr.f32.gmra.mrb[0].mxu0 %v1101
    %v1174 = vpop.f32.mrb[0].mxu0
    %v1175 = vadd.f32 0.0, %v1174
    %v1176 = vpop.f32.mrb[0].mxu0
    %1177 = vdwg.mxu0
    %v1178 = vadd.f32 %v132, %v1170
    %v1179 = vadd.f32 %v137, %v1175
    %s1180 = scalar_lea.vmem %s3, 1
    %v1181 = vld [vmem:[%s1180] sm:$0x1]
    %v1182 = vmul.f32 %v1178, %v1178
    %v1183 = vmul.f32 %v1179, %v1179
    %v1184 = vsel %vm140, %v1182, 0.0
    %1185 = vadd.xlane.f32.xlu0 %v1184
    %v1186 = vpop.xlane.xlu0 %1185
    %v1187 = vsel %vm140, %v1183, 0.0
    %1188 = vadd.xlane.f32.xlu0 %v1187
    %v1189 = vpop.xlane.xlu0 %1188
    %v1190 = vmul.f32 %v1186, %v160
    %v1191 = vmul.f32 %v1189, %v160
    %v1192 = vadd.f32 %v1190, 1e-06
    %v1193 = vadd.f32 %v1191, 1e-06
    %v1194 = vrsqrt.pop %v1192
    %v1195 = vrsqrt.pop %v1193
    %v1196 = vmul.f32 %v1178, %v1194
    %v1197 = vmul.f32 %v1179, %v1195
    %v1199 = vlaneseq
    %v1200 = vshrl.u32 %v1199, 7
    %v1201 = vsub.s32 0, %v1200
    %v1202 = vrot.slane %v1181, %v1201
    %v1204 = vmul.f32 %v1196, %v1202
    %v1205 = vmul.f32 %v1197, %v1202
    %v1206 = vld [vmem:[%s6] sm:$0xff]
    %v1207 = vld [vmem:[%s6 + $0x8] sm:$0xff]
    %v1208 = vld [vmem:[%s6 + $0x10] sm:$0xff]
    %v1209 = vld [vmem:[%s6 + $0x18] sm:$0xff]
    %v1211 = vsel %vm140, %v1204, 0
    %v1214 = vsel %vm140, %v1205, 0
    %1216 = vmatprep.subr.mxu0 0.0
    %1217 = vmatpush1.msra.mxu0 %v1206
    %1218 = vmatprep.subr.mxu0 0.0
    %1219 = vmatpush1.msra.mxu0 %v1207
    %1220 = vmatprep.subr.mxu0 0.0
    %1221 = vmatpush1.msra.mxu0 %v1208
    %1222 = vmatprep.subr.mxu0 0.0
    %1223 = vmatpush1.msra.mxu0 %v1209
    %1224 = vmatprep.subr.mxu0 0.0
    %1225 = vmatpush1.msra.mxu0 0.0
    %1226 = vmatprep.subr.mxu0 0.0
    %1227 = vmatpush1.msra.mxu0 0.0
    %1228 = vmatprep.subr.mxu0 0.0
    %1229 = vmatpush1.msra.mxu0 0.0
    %1230 = vmatprep.subr.mxu0 0.0
    %1231 = vmatpush1.msra.mxu0 0.0
    %1232 = vmatprep.subr.mxu0 0.0
    %1233 = vmatpush1.msra.mxu0 0.0
    %1234 = vmatprep.subr.mxu0 0.0
    %1235 = vmatpush1.msra.mxu0 0.0
    %1236 = vmatprep.subr.mxu0 0.0
    %1237 = vmatpush1.msra.mxu0 0.0
    %1238 = vmatprep.subr.mxu0 0.0
    %1239 = vmatpush1.msra.mxu0 0.0
    %1240 = vmatprep.subr.mxu0 0.0
    %1241 = vmatpush1.msra.mxu0 0.0
    %1242 = vmatprep.subr.mxu0 0.0
    %1243 = vmatpush1.msra.mxu0 0.0
    %1244 = vmatprep.subr.mxu0 0.0
    %1245 = vmatpush1.msra.mxu0 0.0
    %1246 = vmatprep.subr.mxu0 0.0
    %1247 = vmatpush1.msra.mxu0 0.0
    %1248 = vmatprep.subr.mxu0 0.0
    %1249 = vmatpush1.msra.mxu0 0.0
    %1250 = vmatprep.subr.mxu0 0.0
    %1251 = vmatpush1.msra.mxu0 0.0
    %1252 = vmatprep.subr.mxu0 0.0
    %1253 = vmatpush1.msra.mxu0 0.0
    %1254 = vmatprep.subr.mxu0 0.0
    %1255 = vmatpush1.msra.mxu0 0.0
    %1256 = vmatprep.subr.mxu0 0.0
    %1257 = vmatpush1.msra.mxu0 0.0
    %1258 = vmatprep.subr.mxu0 0.0
    %1259 = vmatpush1.msra.mxu0 0.0
    %1260 = vmatprep.subr.mxu0 0.0
    %1261 = vmatpush1.msra.mxu0 0.0
    %1262 = vmatprep.subr.mxu0 0.0
    %1263 = vmatpush1.msra.mxu0 0.0
    %1264 = vmatprep.subr.mxu0 0.0
    %1265 = vmatpush1.msra.mxu0 0.0
    %1266 = vmatprep.subr.mxu0 0.0
    %1267 = vmatpush1.msra.mxu0 0.0
    %1268 = vmatprep.subr.mxu0 0.0
    %1269 = vmatpush1.msra.mxu0 0.0
    %1270 = vmatprep.subr.mxu0 0.0
    %1271 = vmatpush1.msra.mxu0 0.0
    %1272 = vmatprep.subr.mxu0 0.0
    %1273 = vmatpush1.msra.mxu0 0.0
    %1274 = vmatprep.subr.mxu0 0.0
    %1275 = vmatpush1.msra.mxu0 0.0
    %1276 = vmatprep.subr.mxu0 0.0
    %1277 = vmatpush1.msra.mxu0 0.0
    %1278 = vmatprep.subr.mxu0 0.0
    %1279 = vmatpush1.msra.mxu0 0.0
    %1280 = vmatprep.mubr.f32.mxu0 0.0
    %1281 = vmatmul.mubr.f32.gmra.mrb[0].mxu0 %v1211
    %v1282 = vpop.f32.mrb[0].mxu0
    %v1283 = vadd.f32 0.0, %v1282
    %v1284 = vpop.f32.mrb[0].mxu0
    %1285 = vmatprep.mubr.f32.mxu0 0.0
    %1286 = vmatmul.mubr.f32.gmra.mrb[0].mxu0 %v1214
    %v1287 = vpop.f32.mrb[0].mxu0
    %v1288 = vadd.f32 0.0, %v1287
    %v1289 = vpop.f32.mrb[0].mxu0
    %1290 = vdwg.mxu0
    %v1291 = vmax.f32 %v1283, 0.0
    %v1292 = vmax.f32 %v1288, 0.0
    %v1293 = vld [vmem:[%s7] sm:$0xff]
    %v1294 = vld [vmem:[%s7 + $0x8] sm:$0xff]
    %v1295 = vld [vmem:[%s7 + $0x10] sm:$0xff]
    %v1296 = vld [vmem:[%s7 + $0x18] sm:$0xff]
    %v1297 = vld [vmem:[%s7 + $0x20] sm:$0xff]
    %v1298 = vld [vmem:[%s7 + $0x28] sm:$0xff]
    %v1299 = vld [vmem:[%s7 + $0x30] sm:$0xff]
    %v1300 = vld [vmem:[%s7 + $0x38] sm:$0xff]
    %vm1301 = vcmask 523264
    %v1303 = vsel %vm1301, %v1291, 0
    %v1306 = vsel %vm1301, %v1292, 0
    %1308 = vmatprep.subr.mxu0 0.0
    %1309 = vmatpush1.msra.mxu0 %v1293
    %1310 = vmatprep.subr.mxu0 0.0
    %1311 = vmatpush1.msra.mxu0 %v1294
    %1312 = vmatprep.subr.mxu0 0.0
    %1313 = vmatpush1.msra.mxu0 %v1295
    %1314 = vmatprep.subr.mxu0 0.0
    %1315 = vmatpush1.msra.mxu0 %v1296
    %1316 = vmatprep.subr.mxu0 0.0
    %1317 = vmatpush1.msra.mxu0 %v1297
    %1318 = vmatprep.subr.mxu0 0.0
    %1319 = vmatpush1.msra.mxu0 %v1298
    %1320 = vmatprep.subr.mxu0 0.0
    %1321 = vmatpush1.msra.mxu0 %v1299
    %1322 = vmatprep.subr.mxu0 0.0
    %1323 = vmatpush1.msra.mxu0 %v1300
    %1324 = vmatprep.subr.mxu0 0.0
    %1325 = vmatpush1.msra.mxu0 0.0
    %1326 = vmatprep.subr.mxu0 0.0
    %1327 = vmatpush1.msra.mxu0 0.0
    %1328 = vmatprep.subr.mxu0 0.0
    %1329 = vmatpush1.msra.mxu0 0.0
    %1330 = vmatprep.subr.mxu0 0.0
    %1331 = vmatpush1.msra.mxu0 0.0
    %1332 = vmatprep.subr.mxu0 0.0
    %1333 = vmatpush1.msra.mxu0 0.0
    %1334 = vmatprep.subr.mxu0 0.0
    %1335 = vmatpush1.msra.mxu0 0.0
    %1336 = vmatprep.subr.mxu0 0.0
    %1337 = vmatpush1.msra.mxu0 0.0
    %1338 = vmatprep.subr.mxu0 0.0
    %1339 = vmatpush1.msra.mxu0 0.0
    %1340 = vmatprep.subr.mxu0 0.0
    %1341 = vmatpush1.msra.mxu0 0.0
    %1342 = vmatprep.subr.mxu0 0.0
    %1343 = vmatpush1.msra.mxu0 0.0
    %1344 = vmatprep.subr.mxu0 0.0
    %1345 = vmatpush1.msra.mxu0 0.0
    %1346 = vmatprep.subr.mxu0 0.0
    %1347 = vmatpush1.msra.mxu0 0.0
    %1348 = vmatprep.subr.mxu0 0.0
    %1349 = vmatpush1.msra.mxu0 0.0
    %1350 = vmatprep.subr.mxu0 0.0
    %1351 = vmatpush1.msra.mxu0 0.0
    %1352 = vmatprep.subr.mxu0 0.0
    %1353 = vmatpush1.msra.mxu0 0.0
    %1354 = vmatprep.subr.mxu0 0.0
    %1355 = vmatpush1.msra.mxu0 0.0
    %1356 = vmatprep.subr.mxu0 0.0
    %1357 = vmatpush1.msra.mxu0 0.0
    %1358 = vmatprep.subr.mxu0 0.0
    %1359 = vmatpush1.msra.mxu0 0.0
    %1360 = vmatprep.subr.mxu0 0.0
    %1361 = vmatpush1.msra.mxu0 0.0
    %1362 = vmatprep.subr.mxu0 0.0
    %1363 = vmatpush1.msra.mxu0 0.0
    %1364 = vmatprep.subr.mxu0 0.0
    %1365 = vmatpush1.msra.mxu0 0.0
    %1366 = vmatprep.subr.mxu0 0.0
    %1367 = vmatpush1.msra.mxu0 0.0
    %1368 = vmatprep.subr.mxu0 0.0
    %1369 = vmatpush1.msra.mxu0 0.0
    %1370 = vmatprep.subr.mxu0 0.0
    %1371 = vmatpush1.msra.mxu0 0.0
    %1372 = vmatprep.mubr.f32.mxu0 0.0
    %1373 = vmatmul.mubr.f32.gmra.mrb[0].mxu0 %v1303
    %v1374 = vpop.f32.mrb[0].mxu0
    %v1375 = vadd.f32 0.0, %v1374
    %v1376 = vpop.f32.mrb[0].mxu0
    %1377 = vmatprep.mubr.f32.mxu0 0.0
    %1378 = vmatmul.mubr.f32.gmra.mrb[0].mxu0 %v1306
    %v1379 = vpop.f32.mrb[0].mxu0
    %v1380 = vadd.f32 0.0, %v1379
    %v1381 = vpop.f32.mrb[0].mxu0
    %1382 = vdwg.mxu0
    %v1383 = vadd.f32 %v1178, %v1375
    %v1384 = vadd.f32 %v1179, %v1380
    %s1385 = scalar_lea.vmem %s3, 2
    %v1386 = vld [vmem:[%s1385] sm:$0x1]
    %v1387 = vmul.f32 %v1383, %v1383
    %v1388 = vmul.f32 %v1384, %v1384
    %v1389 = vsel %vm140, %v1387, 0.0
    %1390 = vadd.xlane.f32.xlu0 %v1389
    %v1391 = vpop.xlane.xlu0 %1390
    %v1392 = vsel %vm140, %v1388, 0.0
    %1393 = vadd.xlane.f32.xlu0 %v1392
    %v1394 = vpop.xlane.xlu0 %1393
    %v1395 = vmul.f32 %v1391, %v160
    %v1396 = vmul.f32 %v1394, %v160
    %v1397 = vadd.f32 %v1395, 1e-06
    %v1398 = vadd.f32 %v1396, 1e-06
    %v1399 = vrsqrt.pop %v1397
    %v1400 = vrsqrt.pop %v1398
    %v1401 = vmul.f32 %v1383, %v1399
    %v1402 = vmul.f32 %v1384, %v1400
    %v1404 = vlaneseq
    %v1405 = vshrl.u32 %v1404, 7
    %v1406 = vsub.s32 0, %v1405
    %v1407 = vrot.slane %v1386, %v1406
    %v1409 = vmul.f32 %v1401, %v1407
    %v1410 = vmul.f32 %v1402, %v1407
    %s1411 = scalar_lea.vmem %s4, 32
    %v1412 = vld [vmem:[%s1411] sm:$0xff]
    %v1413 = vld [vmem:[%s1411 + $0x8] sm:$0xff]
    %v1414 = vld [vmem:[%s1411 + $0x10] sm:$0xff]
    %v1415 = vld [vmem:[%s1411 + $0x18] sm:$0xff]
    %v1417 = vsel %vm140, %v1409, 0
    %v1420 = vsel %vm140, %v1410, 0
    %1422 = vmatprep.subr.mxu0 0.0
    %1423 = vmatpush1.msra.mxu0 %v1412
    %1424 = vmatprep.subr.mxu0 0.0
    %1425 = vmatpush1.msra.mxu0 %v1413
    %1426 = vmatprep.subr.mxu0 0.0
    %1427 = vmatpush1.msra.mxu0 %v1414
    %1428 = vmatprep.subr.mxu0 0.0
    %1429 = vmatpush1.msra.mxu0 %v1415
    %1430 = vmatprep.subr.mxu0 0.0
    %1431 = vmatpush1.msra.mxu0 0.0
    %1432 = vmatprep.subr.mxu0 0.0
    %1433 = vmatpush1.msra.mxu0 0.0
    %1434 = vmatprep.subr.mxu0 0.0
    %1435 = vmatpush1.msra.mxu0 0.0
    %1436 = vmatprep.subr.mxu0 0.0
    %1437 = vmatpush1.msra.mxu0 0.0
    %1438 = vmatprep.subr.mxu0 0.0
    %1439 = vmatpush1.msra.mxu0 0.0
    %1440 = vmatprep.subr.mxu0 0.0
    %1441 = vmatpush1.msra.mxu0 0.0
    %1442 = vmatprep.subr.mxu0 0.0
    %1443 = vmatpush1.msra.mxu0 0.0
    %1444 = vmatprep.subr.mxu0 0.0
    %1445 = vmatpush1.msra.mxu0 0.0
    %1446 = vmatprep.subr.mxu0 0.0
    %1447 = vmatpush1.msra.mxu0 0.0
    %1448 = vmatprep.subr.mxu0 0.0
    %1449 = vmatpush1.msra.mxu0 0.0
    %1450 = vmatprep.subr.mxu0 0.0
    %1451 = vmatpush1.msra.mxu0 0.0
    %1452 = vmatprep.subr.mxu0 0.0
    %1453 = vmatpush1.msra.mxu0 0.0
    %1454 = vmatprep.subr.mxu0 0.0
    %1455 = vmatpush1.msra.mxu0 0.0
    %1456 = vmatprep.subr.mxu0 0.0
    %1457 = vmatpush1.msra.mxu0 0.0
    %1458 = vmatprep.subr.mxu0 0.0
    %1459 = vmatpush1.msra.mxu0 0.0
    %1460 = vmatprep.subr.mxu0 0.0
    %1461 = vmatpush1.msra.mxu0 0.0
    %1462 = vmatprep.subr.mxu0 0.0
    %1463 = vmatpush1.msra.mxu0 0.0
    %1464 = vmatprep.subr.mxu0 0.0
    %1465 = vmatpush1.msra.mxu0 0.0
    %1466 = vmatprep.subr.mxu0 0.0
    %1467 = vmatpush1.msra.mxu0 0.0
    %1468 = vmatprep.subr.mxu0 0.0
    %1469 = vmatpush1.msra.mxu0 0.0
    %1470 = vmatprep.subr.mxu0 0.0
    %1471 = vmatpush1.msra.mxu0 0.0
    %1472 = vmatprep.subr.mxu0 0.0
    %1473 = vmatpush1.msra.mxu0 0.0
    %1474 = vmatprep.subr.mxu0 0.0
    %1475 = vmatpush1.msra.mxu0 0.0
    %1476 = vmatprep.subr.mxu0 0.0
    %1477 = vmatpush1.msra.mxu0 0.0
    %1478 = vmatprep.subr.mxu0 0.0
    %1479 = vmatpush1.msra.mxu0 0.0
    %1480 = vmatprep.subr.mxu0 0.0
    %1481 = vmatpush1.msra.mxu0 0.0
    %1482 = vmatprep.subr.mxu0 0.0
    %1483 = vmatpush1.msra.mxu0 0.0
    %1484 = vmatprep.subr.mxu0 0.0
    %1485 = vmatpush1.msra.mxu0 0.0
    %1486 = vmatprep.mubr.f32.mxu0 0.0
    %1487 = vmatmul.mubr.f32.gmra.mrb[0].mxu0 %v1417
    %v1488 = vpop.f32.mrb[0].mxu0
    %v1489 = vadd.f32 0.0, %v1488
    %v1490 = vpop.f32.mrb[0].mxu0
    %1491 = vmatprep.mubr.f32.mxu0 0.0
    %1492 = vmatmul.mubr.f32.gmra.mrb[0].mxu0 %v1420
    %v1493 = vpop.f32.mrb[0].mxu0
    %v1494 = vadd.f32 0.0, %v1493
    %v1495 = vpop.f32.mrb[0].mxu0
    %1496 = vdwg.mxu0
    %1499 = vrot.lane.b32.xlu0 %v1489, 120
    %v1500 = vpop.permute.xlu0 %1499
    %1501 = vrot.lane.b32.xlu0 %v1494, 120
    %v1502 = vpop.permute.xlu0 %1501
    %1503 = vrot.lane.b32.xlu0 %v1489, 112
    %v1504 = vpop.permute.xlu0 %1503
    %1505 = vrot.lane.b32.xlu0 %v1494, 112
    %v1506 = vpop.permute.xlu0 %1505
    %1507 = vrot.lane.b32.xlu0 %v1489, 104
    %v1508 = vpop.permute.xlu0 %1507
    %1509 = vrot.lane.b32.xlu0 %v1494, 104
    %v1510 = vpop.permute.xlu0 %1509
    %1511 = vrot.lane.b32.xlu0 %v1489, 96
    %v1512 = vpop.permute.xlu0 %1511
    %1513 = vrot.lane.b32.xlu0 %v1494, 96
    %v1514 = vpop.permute.xlu0 %1513
    %v1515 = vsel %vm280, %v1489, 0
    %v1517 = vsel %vm280, %v1494, 0
    %v1519 = vsel %vm280, %v1512, 0
    %v1521 = vsel %vm280, %v1514, 0
    %1523 = vmatprep.subr.mxu0 0.0
    %1524 = vmatpush1.xpose.msra.mxu0 %v1519
    %1525 = vmatprep.subr.mxu0 0.0
    %1526 = vmatpush1.xpose.msra.mxu0 %v1521
    %1527 = vmatprep.subr.mxu0 0.0
    %1528 = vmatpush1.xpose.msra.mxu0 0.0
    %1529 = vmatprep.subr.mxu0 0.0
    %1530 = vmatpush1.xpose.msra.mxu0 0.0
    %1531 = vmatprep.subr.mxu0 0.0
    %1532 = vmatpush1.xpose.msra.mxu0 0.0
    %1533 = vmatprep.subr.mxu0 0.0
    %1534 = vmatpush1.xpose.msra.mxu0 0.0
    %1535 = vmatprep.subr.mxu0 0.0
    %1536 = vmatpush1.xpose.msra.mxu0 0.0
    %1537 = vmatprep.subr.mxu0 0.0
    %1538 = vmatpush1.xpose.msra.mxu0 0.0
    %1539 = vmatprep.subr.mxu0 0.0
    %1540 = vmatpush1.xpose.msra.mxu0 0.0
    %1541 = vmatprep.subr.mxu0 0.0
    %1542 = vmatpush1.xpose.msra.mxu0 0.0
    %1543 = vmatprep.subr.mxu0 0.0
    %1544 = vmatpush1.xpose.msra.mxu0 0.0
    %1545 = vmatprep.subr.mxu0 0.0
    %1546 = vmatpush1.xpose.msra.mxu0 0.0
    %1547 = vmatprep.subr.mxu0 0.0
    %1548 = vmatpush1.xpose.msra.mxu0 0.0
    %1549 = vmatprep.subr.mxu0 0.0
    %1550 = vmatpush1.xpose.msra.mxu0 0.0
    %1551 = vmatprep.subr.mxu0 0.0
    %1552 = vmatpush1.xpose.msra.mxu0 0.0
    %1553 = vmatprep.subr.mxu0 0.0
    %1554 = vmatpush1.xpose.msra.mxu0 0.0
    %1555 = vmatprep.subr.mxu0 0.0
    %1556 = vmatpush1.xpose.msra.mxu0 0.0
    %1557 = vmatprep.subr.mxu0 0.0
    %1558 = vmatpush1.xpose.msra.mxu0 0.0
    %1559 = vmatprep.subr.mxu0 0.0
    %1560 = vmatpush1.xpose.msra.mxu0 0.0
    %1561 = vmatprep.subr.mxu0 0.0
    %1562 = vmatpush1.xpose.msra.mxu0 0.0
    %1563 = vmatprep.subr.mxu0 0.0
    %1564 = vmatpush1.xpose.msra.mxu0 0.0
    %1565 = vmatprep.subr.mxu0 0.0
    %1566 = vmatpush1.xpose.msra.mxu0 0.0
    %1567 = vmatprep.subr.mxu0 0.0
    %1568 = vmatpush1.xpose.msra.mxu0 0.0
    %1569 = vmatprep.subr.mxu0 0.0
    %1570 = vmatpush1.xpose.msra.mxu0 0.0
    %1571 = vmatprep.subr.mxu0 0.0
    %1572 = vmatpush1.xpose.msra.mxu0 0.0
    %1573 = vmatprep.subr.mxu0 0.0
    %1574 = vmatpush1.xpose.msra.mxu0 0.0
    %1575 = vmatprep.subr.mxu0 0.0
    %1576 = vmatpush1.xpose.msra.mxu0 0.0
    %1577 = vmatprep.subr.mxu0 0.0
    %1578 = vmatpush1.xpose.msra.mxu0 0.0
    %1579 = vmatprep.subr.mxu0 0.0
    %1580 = vmatpush1.xpose.msra.mxu0 0.0
    %1581 = vmatprep.subr.mxu0 0.0
    %1582 = vmatpush1.xpose.msra.mxu0 0.0
    %1583 = vmatprep.subr.mxu0 0.0
    %1584 = vmatpush1.xpose.msra.mxu0 0.0
    %1585 = vmatprep.subr.mxu0 0.0
    %1586 = vmatpush1.xpose.msra.mxu0 0.0
    %1587 = vmatprep.mubr.f32.mxu0 0.0
    %1588 = vmatmul.mubr.f32.gmra.mrb[0].mxu0 %v1515
    %v1589 = vpop.f32.mrb[0].mxu0
    %v1590 = vadd.f32 %v143, %v1589
    %v1591 = vpop.f32.mrb[0].mxu0
    %1592 = vmatprep.mubr.f32.mxu0 0.0
    %1593 = vmatmul.mubr.f32.gmra.mrb[0].mxu0 %v1517
    %v1594 = vpop.f32.mrb[0].mxu0
    %v1595 = vadd.f32 %v144, %v1594
    %v1596 = vpop.f32.mrb[0].mxu0
    %1597 = vdwg.mxu0
    %1598 = vrot.lane.b32.xlu0 %v1500, 96
    %v1599 = vpop.permute.xlu0 %1598
    %1600 = vrot.lane.b32.xlu0 %v1502, 96
    %v1601 = vpop.permute.xlu0 %1600
    %v1602 = vsel %vm280, %v1500, 0
    %v1604 = vsel %vm280, %v1502, 0
    %v1606 = vsel %vm280, %v1599, 0
    %v1608 = vsel %vm280, %v1601, 0
    %1610 = vmatprep.subr.mxu0 0.0
    %1611 = vmatpush1.xpose.msra.mxu0 %v1606
    %1612 = vmatprep.subr.mxu0 0.0
    %1613 = vmatpush1.xpose.msra.mxu0 %v1608
    %1614 = vmatprep.subr.mxu0 0.0
    %1615 = vmatpush1.xpose.msra.mxu0 0.0
    %1616 = vmatprep.subr.mxu0 0.0
    %1617 = vmatpush1.xpose.msra.mxu0 0.0
    %1618 = vmatprep.subr.mxu0 0.0
    %1619 = vmatpush1.xpose.msra.mxu0 0.0
    %1620 = vmatprep.subr.mxu0 0.0
    %1621 = vmatpush1.xpose.msra.mxu0 0.0
    %1622 = vmatprep.subr.mxu0 0.0
    %1623 = vmatpush1.xpose.msra.mxu0 0.0
    %1624 = vmatprep.subr.mxu0 0.0
    %1625 = vmatpush1.xpose.msra.mxu0 0.0
    %1626 = vmatprep.subr.mxu0 0.0
    %1627 = vmatpush1.xpose.msra.mxu0 0.0
    %1628 = vmatprep.subr.mxu0 0.0
    %1629 = vmatpush1.xpose.msra.mxu0 0.0
    %1630 = vmatprep.subr.mxu0 0.0
    %1631 = vmatpush1.xpose.msra.mxu0 0.0
    %1632 = vmatprep.subr.mxu0 0.0
    %1633 = vmatpush1.xpose.msra.mxu0 0.0
    %1634 = vmatprep.subr.mxu0 0.0
    %1635 = vmatpush1.xpose.msra.mxu0 0.0
    %1636 = vmatprep.subr.mxu0 0.0
    %1637 = vmatpush1.xpose.msra.mxu0 0.0
    %1638 = vmatprep.subr.mxu0 0.0
    %1639 = vmatpush1.xpose.msra.mxu0 0.0
    %1640 = vmatprep.subr.mxu0 0.0
    %1641 = vmatpush1.xpose.msra.mxu0 0.0
    %1642 = vmatprep.subr.mxu0 0.0
    %1643 = vmatpush1.xpose.msra.mxu0 0.0
    %1644 = vmatprep.subr.mxu0 0.0
    %1645 = vmatpush1.xpose.msra.mxu0 0.0
    %1646 = vmatprep.subr.mxu0 0.0
    %1647 = vmatpush1.xpose.msra.mxu0 0.0
    %1648 = vmatprep.subr.mxu0 0.0
    %1649 = vmatpush1.xpose.msra.mxu0 0.0
    %1650 = vmatprep.subr.mxu0 0.0
    %1651 = vmatpush1.xpose.msra.mxu0 0.0
    %1652 = vmatprep.subr.mxu0 0.0
    %1653 = vmatpush1.xpose.msra.mxu0 0.0
    %1654 = vmatprep.subr.mxu0 0.0
    %1655 = vmatpush1.xpose.msra.mxu0 0.0
    %1656 = vmatprep.subr.mxu0 0.0
    %1657 = vmatpush1.xpose.msra.mxu0 0.0
    %1658 = vmatprep.subr.mxu0 0.0
    %1659 = vmatpush1.xpose.msra.mxu0 0.0
    %1660 = vmatprep.subr.mxu0 0.0
    %1661 = vmatpush1.xpose.msra.mxu0 0.0
    %1662 = vmatprep.subr.mxu0 0.0
    %1663 = vmatpush1.xpose.msra.mxu0 0.0
    %1664 = vmatprep.subr.mxu0 0.0
    %1665 = vmatpush1.xpose.msra.mxu0 0.0
    %1666 = vmatprep.subr.mxu0 0.0
    %1667 = vmatpush1.xpose.msra.mxu0 0.0
    %1668 = vmatprep.subr.mxu0 0.0
    %1669 = vmatpush1.xpose.msra.mxu0 0.0
    %1670 = vmatprep.subr.mxu0 0.0
    %1671 = vmatpush1.xpose.msra.mxu0 0.0
    %1672 = vmatprep.subr.mxu0 0.0
    %1673 = vmatpush1.xpose.msra.mxu0 0.0
    %1674 = vmatprep.mubr.f32.mxu0 0.0
    %1675 = vmatmul.mubr.f32.gmra.mrb[0].mxu0 %v1602
    %v1676 = vpop.f32.mrb[0].mxu0
    %v1677 = vadd.f32 %v145, %v1676
    %v1678 = vpop.f32.mrb[0].mxu0
    %1679 = vmatprep.mubr.f32.mxu0 0.0
    %1680 = vmatmul.mubr.f32.gmra.mrb[0].mxu0 %v1604
    %v1681 = vpop.f32.mrb[0].mxu0
    %v1682 = vadd.f32 %v146, %v1681
    %v1683 = vpop.f32.mrb[0].mxu0
    %1684 = vdwg.mxu0
    %1685 = vrot.lane.b32.xlu0 %v1504, 96
    %v1686 = vpop.permute.xlu0 %1685
    %1687 = vrot.lane.b32.xlu0 %v1506, 96
    %v1688 = vpop.permute.xlu0 %1687
    %v1689 = vsel %vm280, %v1504, 0
    %v1691 = vsel %vm280, %v1506, 0
    %v1693 = vsel %vm280, %v1686, 0
    %v1695 = vsel %vm280, %v1688, 0
    %1697 = vmatprep.subr.mxu0 0.0
    %1698 = vmatpush1.xpose.msra.mxu0 %v1693
    %1699 = vmatprep.subr.mxu0 0.0
    %1700 = vmatpush1.xpose.msra.mxu0 %v1695
    %1701 = vmatprep.subr.mxu0 0.0
    %1702 = vmatpush1.xpose.msra.mxu0 0.0
    %1703 = vmatprep.subr.mxu0 0.0
    %1704 = vmatpush1.xpose.msra.mxu0 0.0
    %1705 = vmatprep.subr.mxu0 0.0
    %1706 = vmatpush1.xpose.msra.mxu0 0.0
    %1707 = vmatprep.subr.mxu0 0.0
    %1708 = vmatpush1.xpose.msra.mxu0 0.0
    %1709 = vmatprep.subr.mxu0 0.0
    %1710 = vmatpush1.xpose.msra.mxu0 0.0
    %1711 = vmatprep.subr.mxu0 0.0
    %1712 = vmatpush1.xpose.msra.mxu0 0.0
    %1713 = vmatprep.subr.mxu0 0.0
    %1714 = vmatpush1.xpose.msra.mxu0 0.0
    %1715 = vmatprep.subr.mxu0 0.0
    %1716 = vmatpush1.xpose.msra.mxu0 0.0
    %1717 = vmatprep.subr.mxu0 0.0
    %1718 = vmatpush1.xpose.msra.mxu0 0.0
    %1719 = vmatprep.subr.mxu0 0.0
    %1720 = vmatpush1.xpose.msra.mxu0 0.0
    %1721 = vmatprep.subr.mxu0 0.0
    %1722 = vmatpush1.xpose.msra.mxu0 0.0
    %1723 = vmatprep.subr.mxu0 0.0
    %1724 = vmatpush1.xpose.msra.mxu0 0.0
    %1725 = vmatprep.subr.mxu0 0.0
    %1726 = vmatpush1.xpose.msra.mxu0 0.0
    %1727 = vmatprep.subr.mxu0 0.0
    %1728 = vmatpush1.xpose.msra.mxu0 0.0
    %1729 = vmatprep.subr.mxu0 0.0
    %1730 = vmatpush1.xpose.msra.mxu0 0.0
    %1731 = vmatprep.subr.mxu0 0.0
    %1732 = vmatpush1.xpose.msra.mxu0 0.0
    %1733 = vmatprep.subr.mxu0 0.0
    %1734 = vmatpush1.xpose.msra.mxu0 0.0
    %1735 = vmatprep.subr.mxu0 0.0
    %1736 = vmatpush1.xpose.msra.mxu0 0.0
    %1737 = vmatprep.subr.mxu0 0.0
    %1738 = vmatpush1.xpose.msra.mxu0 0.0
    %1739 = vmatprep.subr.mxu0 0.0
    %1740 = vmatpush1.xpose.msra.mxu0 0.0
    %1741 = vmatprep.subr.mxu0 0.0
    %1742 = vmatpush1.xpose.msra.mxu0 0.0
    %1743 = vmatprep.subr.mxu0 0.0
    %1744 = vmatpush1.xpose.msra.mxu0 0.0
    %1745 = vmatprep.subr.mxu0 0.0
    %1746 = vmatpush1.xpose.msra.mxu0 0.0
    %1747 = vmatprep.subr.mxu0 0.0
    %1748 = vmatpush1.xpose.msra.mxu0 0.0
    %1749 = vmatprep.subr.mxu0 0.0
    %1750 = vmatpush1.xpose.msra.mxu0 0.0
    %1751 = vmatprep.subr.mxu0 0.0
    %1752 = vmatpush1.xpose.msra.mxu0 0.0
    %1753 = vmatprep.subr.mxu0 0.0
    %1754 = vmatpush1.xpose.msra.mxu0 0.0
    %1755 = vmatprep.subr.mxu0 0.0
    %1756 = vmatpush1.xpose.msra.mxu0 0.0
    %1757 = vmatprep.subr.mxu0 0.0
    %1758 = vmatpush1.xpose.msra.mxu0 0.0
    %1759 = vmatprep.subr.mxu0 0.0
    %1760 = vmatpush1.xpose.msra.mxu0 0.0
    %1761 = vmatprep.mubr.f32.mxu0 0.0
    %1762 = vmatmul.mubr.f32.gmra.mrb[0].mxu0 %v1689
    %v1763 = vpop.f32.mrb[0].mxu0
    %v1764 = vadd.f32 %v147, %v1763
    %v1765 = vpop.f32.mrb[0].mxu0
    %1766 = vmatprep.mubr.f32.mxu0 0.0
    %1767 = vmatmul.mubr.f32.gmra.mrb[0].mxu0 %v1691
    %v1768 = vpop.f32.mrb[0].mxu0
    %v1769 = vadd.f32 %v148, %v1768
    %v1770 = vpop.f32.mrb[0].mxu0
    %1771 = vdwg.mxu0
    %1772 = vrot.lane.b32.xlu0 %v1508, 96
    %v1773 = vpop.permute.xlu0 %1772
    %1774 = vrot.lane.b32.xlu0 %v1510, 96
    %v1775 = vpop.permute.xlu0 %1774
    %v1776 = vsel %vm280, %v1508, 0
    %v1778 = vsel %vm280, %v1510, 0
    %v1780 = vsel %vm280, %v1773, 0
    %v1782 = vsel %vm280, %v1775, 0
    %1784 = vmatprep.subr.mxu0 0.0
    %1785 = vmatpush1.xpose.msra.mxu0 %v1780
    %1786 = vmatprep.subr.mxu0 0.0
    %1787 = vmatpush1.xpose.msra.mxu0 %v1782
    %1788 = vmatprep.subr.mxu0 0.0
    %1789 = vmatpush1.xpose.msra.mxu0 0.0
    %1790 = vmatprep.subr.mxu0 0.0
    %1791 = vmatpush1.xpose.msra.mxu0 0.0
    %1792 = vmatprep.subr.mxu0 0.0
    %1793 = vmatpush1.xpose.msra.mxu0 0.0
    %1794 = vmatprep.subr.mxu0 0.0
    %1795 = vmatpush1.xpose.msra.mxu0 0.0
    %1796 = vmatprep.subr.mxu0 0.0
    %1797 = vmatpush1.xpose.msra.mxu0 0.0
    %1798 = vmatprep.subr.mxu0 0.0
    %1799 = vmatpush1.xpose.msra.mxu0 0.0
    %1800 = vmatprep.subr.mxu0 0.0
    %1801 = vmatpush1.xpose.msra.mxu0 0.0
    %1802 = vmatprep.subr.mxu0 0.0
    %1803 = vmatpush1.xpose.msra.mxu0 0.0
    %1804 = vmatprep.subr.mxu0 0.0
    %1805 = vmatpush1.xpose.msra.mxu0 0.0
    %1806 = vmatprep.subr.mxu0 0.0
    %1807 = vmatpush1.xpose.msra.mxu0 0.0
    %1808 = vmatprep.subr.mxu0 0.0
    %1809 = vmatpush1.xpose.msra.mxu0 0.0
    %1810 = vmatprep.subr.mxu0 0.0
    %1811 = vmatpush1.xpose.msra.mxu0 0.0
    %1812 = vmatprep.subr.mxu0 0.0
    %1813 = vmatpush1.xpose.msra.mxu0 0.0
    %1814 = vmatprep.subr.mxu0 0.0
    %1815 = vmatpush1.xpose.msra.mxu0 0.0
    %1816 = vmatprep.subr.mxu0 0.0
    %1817 = vmatpush1.xpose.msra.mxu0 0.0
    %1818 = vmatprep.subr.mxu0 0.0
    %1819 = vmatpush1.xpose.msra.mxu0 0.0
    %1820 = vmatprep.subr.mxu0 0.0
    %1821 = vmatpush1.xpose.msra.mxu0 0.0
    %1822 = vmatprep.subr.mxu0 0.0
    %1823 = vmatpush1.xpose.msra.mxu0 0.0
    %1824 = vmatprep.subr.mxu0 0.0
    %1825 = vmatpush1.xpose.msra.mxu0 0.0
    %1826 = vmatprep.subr.mxu0 0.0
    %1827 = vmatpush1.xpose.msra.mxu0 0.0
    %1828 = vmatprep.subr.mxu0 0.0
    %1829 = vmatpush1.xpose.msra.mxu0 0.0
    %1830 = vmatprep.subr.mxu0 0.0
    %1831 = vmatpush1.xpose.msra.mxu0 0.0
    %1832 = vmatprep.subr.mxu0 0.0
    %1833 = vmatpush1.xpose.msra.mxu0 0.0
    %1834 = vmatprep.subr.mxu0 0.0
    %1835 = vmatpush1.xpose.msra.mxu0 0.0
    %1836 = vmatprep.subr.mxu0 0.0
    %1837 = vmatpush1.xpose.msra.mxu0 0.0
    %1838 = vmatprep.subr.mxu0 0.0
    %1839 = vmatpush1.xpose.msra.mxu0 0.0
    %1840 = vmatprep.subr.mxu0 0.0
    %1841 = vmatpush1.xpose.msra.mxu0 0.0
    %1842 = vmatprep.subr.mxu0 0.0
    %1843 = vmatpush1.xpose.msra.mxu0 0.0
    %1844 = vmatprep.subr.mxu0 0.0
    %1845 = vmatpush1.xpose.msra.mxu0 0.0
    %1846 = vmatprep.subr.mxu0 0.0
    %1847 = vmatpush1.xpose.msra.mxu0 0.0
    %1848 = vmatprep.mubr.f32.mxu0 0.0
    %1849 = vmatmul.mubr.f32.gmra.mrb[0].mxu0 %v1776
    %v1850 = vpop.f32.mrb[0].mxu0
    %v1851 = vadd.f32 %v149, %v1850
    %v1852 = vpop.f32.mrb[0].mxu0
    %1853 = vmatprep.mubr.f32.mxu0 0.0
    %1854 = vmatmul.mubr.f32.gmra.mrb[0].mxu0 %v1778
    %v1855 = vpop.f32.mrb[0].mxu0
    %v1856 = vadd.f32 %v150, %v1855
    %v1857 = vpop.f32.mrb[0].mxu0
    %1858 = vdwg.mxu0
    %v1859 = vsel %vm625, %v1590, -inf
    %1860 = vmax.xlane.f32.xlu0 %v1859
    %v1861 = vpop.xlane.xlu0 %1860
    %v1862 = vsel %vm625, %v1595, -inf
    %1863 = vmax.xlane.f32.xlu0 %v1862
    %v1864 = vpop.xlane.xlu0 %1863
    %v1865 = vsel %vm625, %v1677, -inf
    %1866 = vmax.xlane.f32.xlu0 %v1865
    %v1867 = vpop.xlane.xlu0 %1866
    %v1868 = vsel %vm625, %v1682, -inf
    %1869 = vmax.xlane.f32.xlu0 %v1868
    %v1870 = vpop.xlane.xlu0 %1869
    %v1871 = vsel %vm625, %v1764, -inf
    %1872 = vmax.xlane.f32.xlu0 %v1871
    %v1873 = vpop.xlane.xlu0 %1872
    %v1874 = vsel %vm625, %v1769, -inf
    %1875 = vmax.xlane.f32.xlu0 %v1874
    %v1876 = vpop.xlane.xlu0 %1875
    %v1877 = vsel %vm625, %v1851, -inf
    %1878 = vmax.xlane.f32.xlu0 %v1877
    %v1879 = vpop.xlane.xlu0 %1878
    %v1880 = vsel %vm625, %v1856, -inf
    %1881 = vmax.xlane.f32.xlu0 %v1880
    %v1882 = vpop.xlane.xlu0 %1881
    %v1883 = vsub.f32 %v1590, %v1861
    %v1884 = vsub.f32 %v1595, %v1864
    %v1885 = vsub.f32 %v1677, %v1867
    %v1886 = vsub.f32 %v1682, %v1870
    %v1887 = vsub.f32 %v1764, %v1873
    %v1888 = vsub.f32 %v1769, %v1876
    %v1889 = vsub.f32 %v1851, %v1879
    %v1890 = vsub.f32 %v1856, %v1882
    %v1891 = vmul.f32 %v1883, 1.442695
    %v1892 = vpow.pop %v1891
    %v1893 = vmul.f32 %v1884, 1.442695
    %v1894 = vpow.pop %v1893
    %v1895 = vmul.f32 %v1885, 1.442695
    %v1896 = vpow.pop %v1895
    %v1897 = vmul.f32 %v1886, 1.442695
    %v1898 = vpow.pop %v1897
    %v1899 = vmul.f32 %v1887, 1.442695
    %v1900 = vpow.pop %v1899
    %v1901 = vmul.f32 %v1888, 1.442695
    %v1902 = vpow.pop %v1901
    %v1903 = vmul.f32 %v1889, 1.442695
    %v1904 = vpow.pop %v1903
    %v1905 = vmul.f32 %v1890, 1.442695
    %v1906 = vpow.pop %v1905
    %v1907 = vsel %vm625, %v1892, 0.0
    %1908 = vadd.xlane.f32.xlu0 %v1907
    %v1909 = vpop.xlane.xlu0 %1908
    %v1910 = vsel %vm625, %v1894, 0.0
    %1911 = vadd.xlane.f32.xlu0 %v1910
    %v1912 = vpop.xlane.xlu0 %1911
    %v1913 = vsel %vm625, %v1896, 0.0
    %1914 = vadd.xlane.f32.xlu0 %v1913
    %v1915 = vpop.xlane.xlu0 %1914
    %v1916 = vsel %vm625, %v1898, 0.0
    %1917 = vadd.xlane.f32.xlu0 %v1916
    %v1918 = vpop.xlane.xlu0 %1917
    %v1919 = vsel %vm625, %v1900, 0.0
    %1920 = vadd.xlane.f32.xlu0 %v1919
    %v1921 = vpop.xlane.xlu0 %1920
    %v1922 = vsel %vm625, %v1902, 0.0
    %1923 = vadd.xlane.f32.xlu0 %v1922
    %v1924 = vpop.xlane.xlu0 %1923
    %v1925 = vsel %vm625, %v1904, 0.0
    %1926 = vadd.xlane.f32.xlu0 %v1925
    %v1927 = vpop.xlane.xlu0 %1926
    %v1928 = vsel %vm625, %v1906, 0.0
    %1929 = vadd.xlane.f32.xlu0 %v1928
    %v1930 = vpop.xlane.xlu0 %1929
    %v1931 = vrcp.pop %v1909
    %v1932 = vrcp.pop %v1912
    %v1933 = vrcp.pop %v1915
    %v1934 = vrcp.pop %v1918
    %v1935 = vrcp.pop %v1921
    %v1936 = vrcp.pop %v1924
    %v1937 = vrcp.pop %v1927
    %v1938 = vrcp.pop %v1930
    %v1939 = vmul.f32 %v1892, %v1931
    %v1940 = vmul.f32 %v1894, %v1932
    %v1941 = vmul.f32 %v1896, %v1933
    %v1942 = vmul.f32 %v1898, %v1934
    %v1943 = vmul.f32 %v1900, %v1935
    %v1944 = vmul.f32 %v1902, %v1936
    %v1945 = vmul.f32 %v1904, %v1937
    %v1946 = vmul.f32 %v1906, %v1938
    %1947 = vrot.lane.b32.xlu0 %v1489, 64
    %v1948 = vpop.permute.xlu0 %1947
    %1949 = vrot.lane.b32.xlu0 %v1494, 64
    %v1950 = vpop.permute.xlu0 %1949
    %v1954 = vsel %vm625, %v1939, 0
    %v1957 = vsel %vm625, %v1940, 0
    %1959 = vmatprep.subr.mxu0 0.0
    %1960 = vmatpush1.msra.mxu0 %v1948
    %1961 = vmatprep.subr.mxu0 0.0
    %1962 = vmatpush1.msra.mxu0 %v1950
    %1963 = vmatprep.subr.mxu0 0.0
    %1964 = vmatpush1.msra.mxu0 0.0
    %1965 = vmatprep.subr.mxu0 0.0
    %1966 = vmatpush1.msra.mxu0 0.0
    %1967 = vmatprep.subr.mxu0 0.0
    %1968 = vmatpush1.msra.mxu0 0.0
    %1969 = vmatprep.subr.mxu0 0.0
    %1970 = vmatpush1.msra.mxu0 0.0
    %1971 = vmatprep.subr.mxu0 0.0
    %1972 = vmatpush1.msra.mxu0 0.0
    %1973 = vmatprep.subr.mxu0 0.0
    %1974 = vmatpush1.msra.mxu0 0.0
    %1975 = vmatprep.subr.mxu0 0.0
    %1976 = vmatpush1.msra.mxu0 0.0
    %1977 = vmatprep.subr.mxu0 0.0
    %1978 = vmatpush1.msra.mxu0 0.0
    %1979 = vmatprep.subr.mxu0 0.0
    %1980 = vmatpush1.msra.mxu0 0.0
    %1981 = vmatprep.subr.mxu0 0.0
    %1982 = vmatpush1.msra.mxu0 0.0
    %1983 = vmatprep.subr.mxu0 0.0
    %1984 = vmatpush1.msra.mxu0 0.0
    %1985 = vmatprep.subr.mxu0 0.0
    %1986 = vmatpush1.msra.mxu0 0.0
    %1987 = vmatprep.subr.mxu0 0.0
    %1988 = vmatpush1.msra.mxu0 0.0
    %1989 = vmatprep.subr.mxu0 0.0
    %1990 = vmatpush1.msra.mxu0 0.0
    %1991 = vmatprep.subr.mxu0 0.0
    %1992 = vmatpush1.msra.mxu0 0.0
    %1993 = vmatprep.subr.mxu0 0.0
    %1994 = vmatpush1.msra.mxu0 0.0
    %1995 = vmatprep.subr.mxu0 0.0
    %1996 = vmatpush1.msra.mxu0 0.0
    %1997 = vmatprep.subr.mxu0 0.0
    %1998 = vmatpush1.msra.mxu0 0.0
    %1999 = vmatprep.subr.mxu0 0.0
    %2000 = vmatpush1.msra.mxu0 0.0
    %2001 = vmatprep.subr.mxu0 0.0
    %2002 = vmatpush1.msra.mxu0 0.0
    %2003 = vmatprep.subr.mxu0 0.0
    %2004 = vmatpush1.msra.mxu0 0.0
    %2005 = vmatprep.subr.mxu0 0.0
    %2006 = vmatpush1.msra.mxu0 0.0
    %2007 = vmatprep.subr.mxu0 0.0
    %2008 = vmatpush1.msra.mxu0 0.0
    %2009 = vmatprep.subr.mxu0 0.0
    %2010 = vmatpush1.msra.mxu0 0.0
    %2011 = vmatprep.subr.mxu0 0.0
    %2012 = vmatpush1.msra.mxu0 0.0
    %2013 = vmatprep.subr.mxu0 0.0
    %2014 = vmatpush1.msra.mxu0 0.0
    %2015 = vmatprep.subr.mxu0 0.0
    %2016 = vmatpush1.msra.mxu0 0.0
    %2017 = vmatprep.subr.mxu0 0.0
    %2018 = vmatpush1.msra.mxu0 0.0
    %2019 = vmatprep.subr.mxu0 0.0
    %2020 = vmatpush1.msra.mxu0 0.0
    %2021 = vmatprep.subr.mxu0 0.0
    %2022 = vmatpush1.msra.mxu0 0.0
    %2023 = vmatprep.mubr.f32.mxu0 0.0
    %2024 = vmatmul.mubr.f32.gmra.mrb[0].mxu0 %v1954
    %v2025 = vpop.f32.mrb[0].mxu0
    %v2026 = vadd.f32 0.0, %v2025
    %v2027 = vpop.f32.mrb[0].mxu0
    %2028 = vmatprep.mubr.f32.mxu0 0.0
    %2029 = vmatmul.mubr.f32.gmra.mrb[0].mxu0 %v1957
    %v2030 = vpop.f32.mrb[0].mxu0
    %v2031 = vadd.f32 0.0, %v2030
    %v2032 = vpop.f32.mrb[0].mxu0
    %2033 = vdwg.mxu0
    %2034 = vrot.lane.b32.xlu0 %v1500, 64
    %v2035 = vpop.permute.xlu0 %2034
    %2036 = vrot.lane.b32.xlu0 %v1502, 64
    %v2037 = vpop.permute.xlu0 %2036
    %v2041 = vsel %vm625, %v1941, 0
    %v2044 = vsel %vm625, %v1942, 0
    %2046 = vmatprep.subr.mxu0 0.0
    %2047 = vmatpush1.msra.mxu0 %v2035
    %2048 = vmatprep.subr.mxu0 0.0
    %2049 = vmatpush1.msra.mxu0 %v2037
    %2050 = vmatprep.subr.mxu0 0.0
    %2051 = vmatpush1.msra.mxu0 0.0
    %2052 = vmatprep.subr.mxu0 0.0
    %2053 = vmatpush1.msra.mxu0 0.0
    %2054 = vmatprep.subr.mxu0 0.0
    %2055 = vmatpush1.msra.mxu0 0.0
    %2056 = vmatprep.subr.mxu0 0.0
    %2057 = vmatpush1.msra.mxu0 0.0
    %2058 = vmatprep.subr.mxu0 0.0
    %2059 = vmatpush1.msra.mxu0 0.0
    %2060 = vmatprep.subr.mxu0 0.0
    %2061 = vmatpush1.msra.mxu0 0.0
    %2062 = vmatprep.subr.mxu0 0.0
    %2063 = vmatpush1.msra.mxu0 0.0
    %2064 = vmatprep.subr.mxu0 0.0
    %2065 = vmatpush1.msra.mxu0 0.0
    %2066 = vmatprep.subr.mxu0 0.0
    %2067 = vmatpush1.msra.mxu0 0.0
    %2068 = vmatprep.subr.mxu0 0.0
    %2069 = vmatpush1.msra.mxu0 0.0
    %2070 = vmatprep.subr.mxu0 0.0
    %2071 = vmatpush1.msra.mxu0 0.0
    %2072 = vmatprep.subr.mxu0 0.0
    %2073 = vmatpush1.msra.mxu0 0.0
    %2074 = vmatprep.subr.mxu0 0.0
    %2075 = vmatpush1.msra.mxu0 0.0
    %2076 = vmatprep.subr.mxu0 0.0
    %2077 = vmatpush1.msra.mxu0 0.0
    %2078 = vmatprep.subr.mxu0 0.0
    %2079 = vmatpush1.msra.mxu0 0.0
    %2080 = vmatprep.subr.mxu0 0.0
    %2081 = vmatpush1.msra.mxu0 0.0
    %2082 = vmatprep.subr.mxu0 0.0
    %2083 = vmatpush1.msra.mxu0 0.0
    %2084 = vmatprep.subr.mxu0 0.0
    %2085 = vmatpush1.msra.mxu0 0.0
    %2086 = vmatprep.subr.mxu0 0.0
    %2087 = vmatpush1.msra.mxu0 0.0
    %2088 = vmatprep.subr.mxu0 0.0
    %2089 = vmatpush1.msra.mxu0 0.0
    %2090 = vmatprep.subr.mxu0 0.0
    %2091 = vmatpush1.msra.mxu0 0.0
    %2092 = vmatprep.subr.mxu0 0.0
    %2093 = vmatpush1.msra.mxu0 0.0
    %2094 = vmatprep.subr.mxu0 0.0
    %2095 = vmatpush1.msra.mxu0 0.0
    %2096 = vmatprep.subr.mxu0 0.0
    %2097 = vmatpush1.msra.mxu0 0.0
    %2098 = vmatprep.subr.mxu0 0.0
    %2099 = vmatpush1.msra.mxu0 0.0
    %2100 = vmatprep.subr.mxu0 0.0
    %2101 = vmatpush1.msra.mxu0 0.0
    %2102 = vmatprep.subr.mxu0 0.0
    %2103 = vmatpush1.msra.mxu0 0.0
    %2104 = vmatprep.subr.mxu0 0.0
    %2105 = vmatpush1.msra.mxu0 0.0
    %2106 = vmatprep.subr.mxu0 0.0
    %2107 = vmatpush1.msra.mxu0 0.0
    %2108 = vmatprep.subr.mxu0 0.0
    %2109 = vmatpush1.msra.mxu0 0.0
    %2110 = vmatprep.mubr.f32.mxu0 0.0
    %2111 = vmatmul.mubr.f32.gmra.mrb[0].mxu0 %v2041
    %v2112 = vpop.f32.mrb[0].mxu0
    %v2113 = vadd.f32 0.0, %v2112
    %v2114 = vpop.f32.mrb[0].mxu0
    %2115 = vmatprep.mubr.f32.mxu0 0.0
    %2116 = vmatmul.mubr.f32.gmra.mrb[0].mxu0 %v2044
    %v2117 = vpop.f32.mrb[0].mxu0
    %v2118 = vadd.f32 0.0, %v2117
    %v2119 = vpop.f32.mrb[0].mxu0
    %2120 = vdwg.mxu0
    %2121 = vrot.lane.b32.xlu0 %v1504, 64
    %v2122 = vpop.permute.xlu0 %2121
    %2123 = vrot.lane.b32.xlu0 %v1506, 64
    %v2124 = vpop.permute.xlu0 %2123
    %v2128 = vsel %vm625, %v1943, 0
    %v2131 = vsel %vm625, %v1944, 0
    %2133 = vmatprep.subr.mxu0 0.0
    %2134 = vmatpush1.msra.mxu0 %v2122
    %2135 = vmatprep.subr.mxu0 0.0
    %2136 = vmatpush1.msra.mxu0 %v2124
    %2137 = vmatprep.subr.mxu0 0.0
    %2138 = vmatpush1.msra.mxu0 0.0
    %2139 = vmatprep.subr.mxu0 0.0
    %2140 = vmatpush1.msra.mxu0 0.0
    %2141 = vmatprep.subr.mxu0 0.0
    %2142 = vmatpush1.msra.mxu0 0.0
    %2143 = vmatprep.subr.mxu0 0.0
    %2144 = vmatpush1.msra.mxu0 0.0
    %2145 = vmatprep.subr.mxu0 0.0
    %2146 = vmatpush1.msra.mxu0 0.0
    %2147 = vmatprep.subr.mxu0 0.0
    %2148 = vmatpush1.msra.mxu0 0.0
    %2149 = vmatprep.subr.mxu0 0.0
    %2150 = vmatpush1.msra.mxu0 0.0
    %2151 = vmatprep.subr.mxu0 0.0
    %2152 = vmatpush1.msra.mxu0 0.0
    %2153 = vmatprep.subr.mxu0 0.0
    %2154 = vmatpush1.msra.mxu0 0.0
    %2155 = vmatprep.subr.mxu0 0.0
    %2156 = vmatpush1.msra.mxu0 0.0
    %2157 = vmatprep.subr.mxu0 0.0
    %2158 = vmatpush1.msra.mxu0 0.0
    %2159 = vmatprep.subr.mxu0 0.0
    %2160 = vmatpush1.msra.mxu0 0.0
    %2161 = vmatprep.subr.mxu0 0.0
    %2162 = vmatpush1.msra.mxu0 0.0
    %2163 = vmatprep.subr.mxu0 0.0
    %2164 = vmatpush1.msra.mxu0 0.0
    %2165 = vmatprep.subr.mxu0 0.0
    %2166 = vmatpush1.msra.mxu0 0.0
    %2167 = vmatprep.subr.mxu0 0.0
    %2168 = vmatpush1.msra.mxu0 0.0
    %2169 = vmatprep.subr.mxu0 0.0
    %2170 = vmatpush1.msra.mxu0 0.0
    %2171 = vmatprep.subr.mxu0 0.0
    %2172 = vmatpush1.msra.mxu0 0.0
    %2173 = vmatprep.subr.mxu0 0.0
    %2174 = vmatpush1.msra.mxu0 0.0
    %2175 = vmatprep.subr.mxu0 0.0
    %2176 = vmatpush1.msra.mxu0 0.0
    %2177 = vmatprep.subr.mxu0 0.0
    %2178 = vmatpush1.msra.mxu0 0.0
    %2179 = vmatprep.subr.mxu0 0.0
    %2180 = vmatpush1.msra.mxu0 0.0
    %2181 = vmatprep.subr.mxu0 0.0
    %2182 = vmatpush1.msra.mxu0 0.0
    %2183 = vmatprep.subr.mxu0 0.0
    %2184 = vmatpush1.msra.mxu0 0.0
    %2185 = vmatprep.subr.mxu0 0.0
    %2186 = vmatpush1.msra.mxu0 0.0
    %2187 = vmatprep.subr.mxu0 0.0
    %2188 = vmatpush1.msra.mxu0 0.0
    %2189 = vmatprep.subr.mxu0 0.0
    %2190 = vmatpush1.msra.mxu0 0.0
    %2191 = vmatprep.subr.mxu0 0.0
    %2192 = vmatpush1.msra.mxu0 0.0
    %2193 = vmatprep.subr.mxu0 0.0
    %2194 = vmatpush1.msra.mxu0 0.0
    %2195 = vmatprep.subr.mxu0 0.0
    %2196 = vmatpush1.msra.mxu0 0.0
    %2197 = vmatprep.mubr.f32.mxu0 0.0
    %2198 = vmatmul.mubr.f32.gmra.mrb[0].mxu0 %v2128
    %v2199 = vpop.f32.mrb[0].mxu0
    %v2200 = vadd.f32 0.0, %v2199
    %v2201 = vpop.f32.mrb[0].mxu0
    %2202 = vmatprep.mubr.f32.mxu0 0.0
    %2203 = vmatmul.mubr.f32.gmra.mrb[0].mxu0 %v2131
    %v2204 = vpop.f32.mrb[0].mxu0
    %v2205 = vadd.f32 0.0, %v2204
    %v2206 = vpop.f32.mrb[0].mxu0
    %2207 = vdwg.mxu0
    %2208 = vrot.lane.b32.xlu0 %v1508, 64
    %v2209 = vpop.permute.xlu0 %2208
    %2210 = vrot.lane.b32.xlu0 %v1510, 64
    %v2211 = vpop.permute.xlu0 %2210
    %v2215 = vsel %vm625, %v1945, 0
    %v2218 = vsel %vm625, %v1946, 0
    %2220 = vmatprep.subr.mxu0 0.0
    %2221 = vmatpush1.msra.mxu0 %v2209
    %2222 = vmatprep.subr.mxu0 0.0
    %2223 = vmatpush1.msra.mxu0 %v2211
    %2224 = vmatprep.subr.mxu0 0.0
    %2225 = vmatpush1.msra.mxu0 0.0
    %2226 = vmatprep.subr.mxu0 0.0
    %2227 = vmatpush1.msra.mxu0 0.0
    %2228 = vmatprep.subr.mxu0 0.0
    %2229 = vmatpush1.msra.mxu0 0.0
    %2230 = vmatprep.subr.mxu0 0.0
    %2231 = vmatpush1.msra.mxu0 0.0
    %2232 = vmatprep.subr.mxu0 0.0
    %2233 = vmatpush1.msra.mxu0 0.0
    %2234 = vmatprep.subr.mxu0 0.0
    %2235 = vmatpush1.msra.mxu0 0.0
    %2236 = vmatprep.subr.mxu0 0.0
    %2237 = vmatpush1.msra.mxu0 0.0
    %2238 = vmatprep.subr.mxu0 0.0
    %2239 = vmatpush1.msra.mxu0 0.0
    %2240 = vmatprep.subr.mxu0 0.0
    %2241 = vmatpush1.msra.mxu0 0.0
    %2242 = vmatprep.subr.mxu0 0.0
    %2243 = vmatpush1.msra.mxu0 0.0
    %2244 = vmatprep.subr.mxu0 0.0
    %2245 = vmatpush1.msra.mxu0 0.0
    %2246 = vmatprep.subr.mxu0 0.0
    %2247 = vmatpush1.msra.mxu0 0.0
    %2248 = vmatprep.subr.mxu0 0.0
    %2249 = vmatpush1.msra.mxu0 0.0
    %2250 = vmatprep.subr.mxu0 0.0
    %2251 = vmatpush1.msra.mxu0 0.0
    %2252 = vmatprep.subr.mxu0 0.0
    %2253 = vmatpush1.msra.mxu0 0.0
    %2254 = vmatprep.subr.mxu0 0.0
    %2255 = vmatpush1.msra.mxu0 0.0
    %2256 = vmatprep.subr.mxu0 0.0
    %2257 = vmatpush1.msra.mxu0 0.0
    %2258 = vmatprep.subr.mxu0 0.0
    %2259 = vmatpush1.msra.mxu0 0.0
    %2260 = vmatprep.subr.mxu0 0.0
    %2261 = vmatpush1.msra.mxu0 0.0
    %2262 = vmatprep.subr.mxu0 0.0
    %2263 = vmatpush1.msra.mxu0 0.0
    %2264 = vmatprep.subr.mxu0 0.0
    %2265 = vmatpush1.msra.mxu0 0.0
    %2266 = vmatprep.subr.mxu0 0.0
    %2267 = vmatpush1.msra.mxu0 0.0
    %2268 = vmatprep.subr.mxu0 0.0
    %2269 = vmatpush1.msra.mxu0 0.0
    %2270 = vmatprep.subr.mxu0 0.0
    %2271 = vmatpush1.msra.mxu0 0.0
    %2272 = vmatprep.subr.mxu0 0.0
    %2273 = vmatpush1.msra.mxu0 0.0
    %2274 = vmatprep.subr.mxu0 0.0
    %2275 = vmatpush1.msra.mxu0 0.0
    %2276 = vmatprep.subr.mxu0 0.0
    %2277 = vmatpush1.msra.mxu0 0.0
    %2278 = vmatprep.subr.mxu0 0.0
    %2279 = vmatpush1.msra.mxu0 0.0
    %2280 = vmatprep.subr.mxu0 0.0
    %2281 = vmatpush1.msra.mxu0 0.0
    %2282 = vmatprep.subr.mxu0 0.0
    %2283 = vmatpush1.msra.mxu0 0.0
    %2284 = vmatprep.mubr.f32.mxu0 0.0
    %2285 = vmatmul.mubr.f32.gmra.mrb[0].mxu0 %v2215
    %v2286 = vpop.f32.mrb[0].mxu0
    %v2287 = vadd.f32 0.0, %v2286
    %v2288 = vpop.f32.mrb[0].mxu0
    %2289 = vmatprep.mubr.f32.mxu0 0.0
    %2290 = vmatmul.mubr.f32.gmra.mrb[0].mxu0 %v2218
    %v2291 = vpop.f32.mrb[0].mxu0
    %v2292 = vadd.f32 0.0, %v2291
    %v2293 = vpop.f32.mrb[0].mxu0
    %2294 = vdwg.mxu0
    %2297 = vrot.lane.b32.xlu0 %v2113, 8
    %v2298 = vpop.permute.xlu0 %2297
    %2299 = vrot.lane.b32.xlu0 %v2118, 8
    %v2300 = vpop.permute.xlu0 %2299
    %2305 = vrot.lane.b32.xlu0 %v2200, 16
    %v2306 = vpop.permute.xlu0 %2305
    %2307 = vrot.lane.b32.xlu0 %v2205, 16
    %v2308 = vpop.permute.xlu0 %2307
    %2313 = vrot.lane.b32.xlu0 %v2287, 24
    %v2314 = vpop.permute.xlu0 %2313
    %2315 = vrot.lane.b32.xlu0 %v2292, 24
    %v2316 = vpop.permute.xlu0 %2315
    %v2319 = vsel %vm280, %v2026, %v2298
    %v2320 = vsel %vm280, %v2031, %v2300
    %v2321 = vsel %vm625, %v2319, %v2306
    %v2322 = vsel %vm625, %v2320, %v2308
    %v2323 = vsel %vm1090, %v2321, %v2314
    %v2324 = vsel %vm1090, %v2322, %v2316
    %s2325 = scalar_lea.vmem %s5, 32
    %v2326 = vld [vmem:[%s2325] sm:$0xff]
    %v2327 = vld [vmem:[%s2325 + $0x8] sm:$0xff]
    %v2328 = vld [vmem:[%s2325 + $0x10] sm:$0xff]
    %v2329 = vld [vmem:[%s2325 + $0x18] sm:$0xff]
    %v2331 = vsel %vm140, %v2323, 0
    %v2334 = vsel %vm140, %v2324, 0
    %2336 = vmatprep.subr.mxu0 0.0
    %2337 = vmatpush1.msra.mxu0 %v2326
    %2338 = vmatprep.subr.mxu0 0.0
    %2339 = vmatpush1.msra.mxu0 %v2327
    %2340 = vmatprep.subr.mxu0 0.0
    %2341 = vmatpush1.msra.mxu0 %v2328
    %2342 = vmatprep.subr.mxu0 0.0
    %2343 = vmatpush1.msra.mxu0 %v2329
    %2344 = vmatprep.subr.mxu0 0.0
    %2345 = vmatpush1.msra.mxu0 0.0
    %2346 = vmatprep.subr.mxu0 0.0
    %2347 = vmatpush1.msra.mxu0 0.0
    %2348 = vmatprep.subr.mxu0 0.0
    %2349 = vmatpush1.msra.mxu0 0.0
    %2350 = vmatprep.subr.mxu0 0.0
    %2351 = vmatpush1.msra.mxu0 0.0
    %2352 = vmatprep.subr.mxu0 0.0
    %2353 = vmatpush1.msra.mxu0 0.0
    %2354 = vmatprep.subr.mxu0 0.0
    %2355 = vmatpush1.msra.mxu0 0.0
    %2356 = vmatprep.subr.mxu0 0.0
    %2357 = vmatpush1.msra.mxu0 0.0
    %2358 = vmatprep.subr.mxu0 0.0
    %2359 = vmatpush1.msra.mxu0 0.0
    %2360 = vmatprep.subr.mxu0 0.0
    %2361 = vmatpush1.msra.mxu0 0.0
    %2362 = vmatprep.subr.mxu0 0.0
    %2363 = vmatpush1.msra.mxu0 0.0
    %2364 = vmatprep.subr.mxu0 0.0
    %2365 = vmatpush1.msra.mxu0 0.0
    %2366 = vmatprep.subr.mxu0 0.0
    %2367 = vmatpush1.msra.mxu0 0.0
    %2368 = vmatprep.subr.mxu0 0.0
    %2369 = vmatpush1.msra.mxu0 0.0
    %2370 = vmatprep.subr.mxu0 0.0
    %2371 = vmatpush1.msra.mxu0 0.0
    %2372 = vmatprep.subr.mxu0 0.0
    %2373 = vmatpush1.msra.mxu0 0.0
    %2374 = vmatprep.subr.mxu0 0.0
    %2375 = vmatpush1.msra.mxu0 0.0
    %2376 = vmatprep.subr.mxu0 0.0
    %2377 = vmatpush1.msra.mxu0 0.0
    %2378 = vmatprep.subr.mxu0 0.0
    %2379 = vmatpush1.msra.mxu0 0.0
    %2380 = vmatprep.subr.mxu0 0.0
    %2381 = vmatpush1.msra.mxu0 0.0
    %2382 = vmatprep.subr.mxu0 0.0
    %2383 = vmatpush1.msra.mxu0 0.0
    %2384 = vmatprep.subr.mxu0 0.0
    %2385 = vmatpush1.msra.mxu0 0.0
    %2386 = vmatprep.subr.mxu0 0.0
    %2387 = vmatpush1.msra.mxu0 0.0
    %2388 = vmatprep.subr.mxu0 0.0
    %2389 = vmatpush1.msra.mxu0 0.0
    %2390 = vmatprep.subr.mxu0 0.0
    %2391 = vmatpush1.msra.mxu0 0.0
    %2392 = vmatprep.subr.mxu0 0.0
    %2393 = vmatpush1.msra.mxu0 0.0
    %2394 = vmatprep.subr.mxu0 0.0
    %2395 = vmatpush1.msra.mxu0 0.0
    %2396 = vmatprep.subr.mxu0 0.0
    %2397 = vmatpush1.msra.mxu0 0.0
    %2398 = vmatprep.subr.mxu0 0.0
    %2399 = vmatpush1.msra.mxu0 0.0
    %2400 = vmatprep.mubr.f32.mxu0 0.0
    %2401 = vmatmul.mubr.f32.gmra.mrb[0].mxu0 %v2331
    %v2402 = vpop.f32.mrb[0].mxu0
    %v2403 = vadd.f32 0.0, %v2402
    %v2404 = vpop.f32.mrb[0].mxu0
    %2405 = vmatprep.mubr.f32.mxu0 0.0
    %2406 = vmatmul.mubr.f32.gmra.mrb[0].mxu0 %v2334
    %v2407 = vpop.f32.mrb[0].mxu0
    %v2408 = vadd.f32 0.0, %v2407
    %v2409 = vpop.f32.mrb[0].mxu0
    %2410 = vdwg.mxu0
    %v2411 = vadd.f32 %v1383, %v2403
    %v2412 = vadd.f32 %v1384, %v2408
    %s2413 = scalar_lea.vmem %s3, 3
    %v2414 = vld [vmem:[%s2413] sm:$0x1]
    %v2415 = vmul.f32 %v2411, %v2411
    %v2416 = vmul.f32 %v2412, %v2412
    %v2417 = vsel %vm140, %v2415, 0.0
    %2418 = vadd.xlane.f32.xlu0 %v2417
    %v2419 = vpop.xlane.xlu0 %2418
    %v2420 = vsel %vm140, %v2416, 0.0
    %2421 = vadd.xlane.f32.xlu0 %v2420
    %v2422 = vpop.xlane.xlu0 %2421
    %v2423 = vmul.f32 %v2419, %v160
    %v2424 = vmul.f32 %v2422, %v160
    %v2425 = vadd.f32 %v2423, 1e-06
    %v2426 = vadd.f32 %v2424, 1e-06
    %v2427 = vrsqrt.pop %v2425
    %v2428 = vrsqrt.pop %v2426
    %v2429 = vmul.f32 %v2411, %v2427
    %v2430 = vmul.f32 %v2412, %v2428
    %v2432 = vlaneseq
    %v2433 = vshrl.u32 %v2432, 7
    %v2434 = vsub.s32 0, %v2433
    %v2435 = vrot.slane %v2414, %v2434
    %v2437 = vmul.f32 %v2429, %v2435
    %v2438 = vmul.f32 %v2430, %v2435
    %s2439 = scalar_lea.vmem %s6, 32
    %v2440 = vld [vmem:[%s2439] sm:$0xff]
    %v2441 = vld [vmem:[%s2439 + $0x8] sm:$0xff]
    %v2442 = vld [vmem:[%s2439 + $0x10] sm:$0xff]
    %v2443 = vld [vmem:[%s2439 + $0x18] sm:$0xff]
    %v2445 = vsel %vm140, %v2437, 0
    %v2448 = vsel %vm140, %v2438, 0
    %2450 = vmatprep.subr.mxu0 0.0
    %2451 = vmatpush1.msra.mxu0 %v2440
    %2452 = vmatprep.subr.mxu0 0.0
    %2453 = vmatpush1.msra.mxu0 %v2441
    %2454 = vmatprep.subr.mxu0 0.0
    %2455 = vmatpush1.msra.mxu0 %v2442
    %2456 = vmatprep.subr.mxu0 0.0
    %2457 = vmatpush1.msra.mxu0 %v2443
    %2458 = vmatprep.subr.mxu0 0.0
    %2459 = vmatpush1.msra.mxu0 0.0
    %2460 = vmatprep.subr.mxu0 0.0
    %2461 = vmatpush1.msra.mxu0 0.0
    %2462 = vmatprep.subr.mxu0 0.0
    %2463 = vmatpush1.msra.mxu0 0.0
    %2464 = vmatprep.subr.mxu0 0.0
    %2465 = vmatpush1.msra.mxu0 0.0
    %2466 = vmatprep.subr.mxu0 0.0
    %2467 = vmatpush1.msra.mxu0 0.0
    %2468 = vmatprep.subr.mxu0 0.0
    %2469 = vmatpush1.msra.mxu0 0.0
    %2470 = vmatprep.subr.mxu0 0.0
    %2471 = vmatpush1.msra.mxu0 0.0
    %2472 = vmatprep.subr.mxu0 0.0
    %2473 = vmatpush1.msra.mxu0 0.0
    %2474 = vmatprep.subr.mxu0 0.0
    %2475 = vmatpush1.msra.mxu0 0.0
    %2476 = vmatprep.subr.mxu0 0.0
    %2477 = vmatpush1.msra.mxu0 0.0
    %2478 = vmatprep.subr.mxu0 0.0
    %2479 = vmatpush1.msra.mxu0 0.0
    %2480 = vmatprep.subr.mxu0 0.0
    %2481 = vmatpush1.msra.mxu0 0.0
    %2482 = vmatprep.subr.mxu0 0.0
    %2483 = vmatpush1.msra.mxu0 0.0
    %2484 = vmatprep.subr.mxu0 0.0
    %2485 = vmatpush1.msra.mxu0 0.0
    %2486 = vmatprep.subr.mxu0 0.0
    %2487 = vmatpush1.msra.mxu0 0.0
    %2488 = vmatprep.subr.mxu0 0.0
    %2489 = vmatpush1.msra.mxu0 0.0
    %2490 = vmatprep.subr.mxu0 0.0
    %2491 = vmatpush1.msra.mxu0 0.0
    %2492 = vmatprep.subr.mxu0 0.0
    %2493 = vmatpush1.msra.mxu0 0.0
    %2494 = vmatprep.subr.mxu0 0.0
    %2495 = vmatpush1.msra.mxu0 0.0
    %2496 = vmatprep.subr.mxu0 0.0
    %2497 = vmatpush1.msra.mxu0 0.0
    %2498 = vmatprep.subr.mxu0 0.0
    %2499 = vmatpush1.msra.mxu0 0.0
    %2500 = vmatprep.subr.mxu0 0.0
    %2501 = vmatpush1.msra.mxu0 0.0
    %2502 = vmatprep.subr.mxu0 0.0
    %2503 = vmatpush1.msra.mxu0 0.0
    %2504 = vmatprep.subr.mxu0 0.0
    %2505 = vmatpush1.msra.mxu0 0.0
    %2506 = vmatprep.subr.mxu0 0.0
    %2507 = vmatpush1.msra.mxu0 0.0
    %2508 = vmatprep.subr.mxu0 0.0
    %2509 = vmatpush1.msra.mxu0 0.0
    %2510 = vmatprep.subr.mxu0 0.0
    %2511 = vmatpush1.msra.mxu0 0.0
    %2512 = vmatprep.subr.mxu0 0.0
    %2513 = vmatpush1.msra.mxu0 0.0
    %2514 = vmatprep.mubr.f32.mxu0 0.0
    %2515 = vmatmul.mubr.f32.gmra.mrb[0].mxu0 %v2445
    %v2516 = vpop.f32.mrb[0].mxu0
    %v2517 = vadd.f32 0.0, %v2516
    %v2518 = vpop.f32.mrb[0].mxu0
    %2519 = vmatprep.mubr.f32.mxu0 0.0
    %2520 = vmatmul.mubr.f32.gmra.mrb[0].mxu0 %v2448
    %v2521 = vpop.f32.mrb[0].mxu0
    %v2522 = vadd.f32 0.0, %v2521
    %v2523 = vpop.f32.mrb[0].mxu0
    %2524 = vdwg.mxu0
    %v2525 = vmax.f32 %v2517, 0.0
    %v2526 = vmax.f32 %v2522, 0.0
    %s2527 = scalar_lea.vmem %s7, 64
    %v2528 = vld [vmem:[%s2527] sm:$0xff]
    %v2529 = vld [vmem:[%s2527 + $0x8] sm:$0xff]
    %v2530 = vld [vmem:[%s2527 + $0x10] sm:$0xff]
    %v2531 = vld [vmem:[%s2527 + $0x18] sm:$0xff]
    %v2532 = vld [vmem:[%s2527 + $0x20] sm:$0xff]
    %v2533 = vld [vmem:[%s2527 + $0x28] sm:$0xff]
    %v2534 = vld [vmem:[%s2527 + $0x30] sm:$0xff]
    %v2535 = vld [vmem:[%s2527 + $0x38] sm:$0xff]
    %v2537 = vsel %vm1301, %v2525, 0
    %v2540 = vsel %vm1301, %v2526, 0
    %2542 = vmatprep.subr.mxu0 0.0
    %2543 = vmatpush1.msra.mxu0 %v2528
    %2544 = vmatprep.subr.mxu0 0.0
    %2545 = vmatpush1.msra.mxu0 %v2529
    %2546 = vmatprep.subr.mxu0 0.0
    %2547 = vmatpush1.msra.mxu0 %v2530
    %2548 = vmatprep.subr.mxu0 0.0
    %2549 = vmatpush1.msra.mxu0 %v2531
    %2550 = vmatprep.subr.mxu0 0.0
    %2551 = vmatpush1.msra.mxu0 %v2532
    %2552 = vmatprep.subr.mxu0 0.0
    %2553 = vmatpush1.msra.mxu0 %v2533
    %2554 = vmatprep.subr.mxu0 0.0
    %2555 = vmatpush1.msra.mxu0 %v2534
    %2556 = vmatprep.subr.mxu0 0.0
    %2557 = vmatpush1.msra.mxu0 %v2535
    %2558 = vmatprep.subr.mxu0 0.0
    %2559 = vmatpush1.msra.mxu0 0.0
    %2560 = vmatprep.subr.mxu0 0.0
    %2561 = vmatpush1.msra.mxu0 0.0
    %2562 = vmatprep.subr.mxu0 0.0
    %2563 = vmatpush1.msra.mxu0 0.0
    %2564 = vmatprep.subr.mxu0 0.0
    %2565 = vmatpush1.msra.mxu0 0.0
    %2566 = vmatprep.subr.mxu0 0.0
    %2567 = vmatpush1.msra.mxu0 0.0
    %2568 = vmatprep.subr.mxu0 0.0
    %2569 = vmatpush1.msra.mxu0 0.0
    %2570 = vmatprep.subr.mxu0 0.0
    %2571 = vmatpush1.msra.mxu0 0.0
    %2572 = vmatprep.subr.mxu0 0.0
    %2573 = vmatpush1.msra.mxu0 0.0
    %2574 = vmatprep.subr.mxu0 0.0
    %2575 = vmatpush1.msra.mxu0 0.0
    %2576 = vmatprep.subr.mxu0 0.0
    %2577 = vmatpush1.msra.mxu0 0.0
    %2578 = vmatprep.subr.mxu0 0.0
    %2579 = vmatpush1.msra.mxu0 0.0
    %2580 = vmatprep.subr.mxu0 0.0
    %2581 = vmatpush1.msra.mxu0 0.0
    %2582 = vmatprep.subr.mxu0 0.0
    %2583 = vmatpush1.msra.mxu0 0.0
    %2584 = vmatprep.subr.mxu0 0.0
    %2585 = vmatpush1.msra.mxu0 0.0
    %2586 = vmatprep.subr.mxu0 0.0
    %2587 = vmatpush1.msra.mxu0 0.0
    %2588 = vmatprep.subr.mxu0 0.0
    %2589 = vmatpush1.msra.mxu0 0.0
    %2590 = vmatprep.subr.mxu0 0.0
    %2591 = vmatpush1.msra.mxu0 0.0
    %2592 = vmatprep.subr.mxu0 0.0
    %2593 = vmatpush1.msra.mxu0 0.0
    %2594 = vmatprep.subr.mxu0 0.0
    %2595 = vmatpush1.msra.mxu0 0.0
    %2596 = vmatprep.subr.mxu0 0.0
    %2597 = vmatpush1.msra.mxu0 0.0
    %2598 = vmatprep.subr.mxu0 0.0
    %2599 = vmatpush1.msra.mxu0 0.0
    %2600 = vmatprep.subr.mxu0 0.0
    %2601 = vmatpush1.msra.mxu0 0.0
    %2602 = vmatprep.subr.mxu0 0.0
    %2603 = vmatpush1.msra.mxu0 0.0
    %2604 = vmatprep.subr.mxu0 0.0
    %2605 = vmatpush1.msra.mxu0 0.0
    %2606 = vmatprep.mubr.f32.mxu0 0.0
    %2607 = vmatmul.mubr.f32.gmra.mrb[0].mxu0 %v2537
    %v2608 = vpop.f32.mrb[0].mxu0
    %v2609 = vadd.f32 0.0, %v2608
    %v2610 = vpop.f32.mrb[0].mxu0
    %2611 = vmatprep.mubr.f32.mxu0 0.0
    %2612 = vmatmul.mubr.f32.gmra.mrb[0].mxu0 %v2540
    %v2613 = vpop.f32.mrb[0].mxu0
    %v2614 = vadd.f32 0.0, %v2613
    %v2615 = vpop.f32.mrb[0].mxu0
    %2616 = vdwg.mxu0
    %v2617 = vadd.f32 %v2411, %v2609
    %v2618 = vadd.f32 %v2412, %v2614
    %s2619 = scalar_lea.vmem %s3, 4
    %v2620 = vld [vmem:[%s2619] sm:$0x1]
    %v2621 = vmul.f32 %v2617, %v2617
    %v2622 = vmul.f32 %v2618, %v2618
    %v2623 = vsel %vm140, %v2621, 0.0
    %2624 = vadd.xlane.f32.xlu0 %v2623
    %v2625 = vpop.xlane.xlu0 %2624
    %v2626 = vsel %vm140, %v2622, 0.0
    %2627 = vadd.xlane.f32.xlu0 %v2626
    %v2628 = vpop.xlane.xlu0 %2627
    %v2629 = vmul.f32 %v2625, %v160
    %v2630 = vmul.f32 %v2628, %v160
    %v2631 = vadd.f32 %v2629, 1e-06
    %v2632 = vadd.f32 %v2630, 1e-06
    %v2633 = vrsqrt.pop %v2631
    %v2634 = vrsqrt.pop %v2632
    %v2635 = vmul.f32 %v2617, %v2633
    %v2636 = vmul.f32 %v2618, %v2634
    %v2638 = vlaneseq
    %v2639 = vshrl.u32 %v2638, 7
    %v2640 = vsub.s32 0, %v2639
    %v2641 = vrot.slane %v2620, %v2640
    %v2643 = vmul.f32 %v2635, %v2641
    %v2644 = vmul.f32 %v2636, %v2641
    %2645 = vst.msk [vmem:[#allocation4] sm:$0xff] %vm140, %v2643
    %2646 = vst.msk [vmem:[#allocation4 + $0x8] sm:$0xff] %vm140, %v2644
    // Predicated region
    $region34: #{t5_with_t5decoder_forward.1} parent=1 // pred_check
      _
    $region35: #{t5_with_t5decoder_forward.1} parent=1 // pred_check_branch
      %2648 = sbr.rel (0) target = $region37
    $region36: #{t5_with_t5decoder_forward.1} parent=1 // pred_region
      %s2650 = ssub.s32 256, 256
      %2651 = vsyncadd [#allocation3], %s2650
      %s2652 = sshll.u32 [#allocation2], 4
      %s2653 = int_to_ptr.vmem [resolvable:$true] %s2652
      %2658 = dma.vmem_to_hbm [thread:$0]  %s2653, 256, %s8, [#allocation3], 128, 128, 8
    $region37: #{t5_with_t5decoder_forward.1} parent=1 // pred_fallthru
      _
    // Predicated region
    $region38: #{t5_with_t5decoder_forward.1} parent=1 // pred_check
      _
    $region39: #{t5_with_t5decoder_forward.1} parent=1 // pred_check_branch
      %2660 = sbr.rel (0) target = $region41
    $region40: #{t5_with_t5decoder_forward.1} parent=1 // pred_region
      %s2662 = ssub.s32 256, 256
      %2663 = vsyncadd [#allocation5], %s2662
      %s2664 = sshll.u32 [#allocation4], 4
      %s2665 = int_to_ptr.vmem [resolvable:$true] %s2664
      %2670 = dma.vmem_to_hbm [thread:$0]  %s2665, 256, %s9, [#allocation5], 128, 128, 8
    $region41: #{t5_with_t5decoder_forward.1} parent=1 // pred_fallthru
      _
    // Predicated region
    $region42: #{t5_with_t5decoder_forward.1} parent=1 // pred_check
      _
    $region43: #{t5_with_t5decoder_forward.1} parent=1 // pred_check_branch
      %2672 = sbr.rel (0) target = $region45
    $region44: #{t5_with_t5decoder_forward.1} parent=1 // pred_region
      %2673 = dma.done [#allocation3], 256
    $region45: #{t5_with_t5decoder_forward.1} parent=1 // pred_fallthru
      _
    // Predicated region
    $region46: #{t5_with_t5decoder_forward.1} parent=1 // pred_check
      _
    $region47: #{t5_with_t5decoder_forward.1} parent=1 // pred_check_branch
      %2675 = sbr.rel (0) target = $region49
    $region48: #{t5_with_t5decoder_forward.1} parent=1 // pred_region
      %2676 = dma.done [#allocation5], 256
    $region49: #{t5_with_t5decoder_forward.1} parent=1 // pred_fallthru
      _
    %2677 = vsyncpa [#allocation3], 1
    %2678 = vsyncpa [#allocation5], 1

</llo_original>
